<compile_context>
chip_gen: v7x
topology: tpu7x:2x2x1
jax: 0.10.0
libtpu: 0.0.40
codegen_flags: <defaults>
</compile_context>

<pallas_src>
import functools
import math

import jax
import jax.numpy as jnp
from jax.experimental import pallas as pl
from jax.experimental.pallas import tpu as pltpu


# ------------------------- fused encoder + decoder kernel -------------------------
def _autoreg_lstm_kernel(x_ref, ewih_ref, ewhh_ref, eb_ref,
                         dwih_ref, db_ref, w1_ref, b1_ref, w2_ref, b2_ref,
                         out_ref, *, batch, seq_len, hidden, n_steps):
    B, T, H = batch, seq_len, hidden
    H4 = 4 * H
    F = w2_ref.shape[1]

    # ---- hoist all weight / bias loads once (no per-step vld or broadcast) ----
    ewih = ewih_ref[...]           # (F, 4H) bf16, gate order i|f|g|o along lanes
    ewhh = ewhh_ref[...]           # (H, 4H) bf16
    eb = eb_ref[...]               # (1, 4H) f32  (b_ih + b_hh)
    dwih = dwih_ref[...]           # (H, 4H) bf16
    w1 = w1_ref[...]               # (H, H) bf16
    w2 = w2_ref[...]               # (H, F) bf16

    db_b = jnp.broadcast_to(db_ref[...], (B, H4))      # decoder gate bias
    b1 = jnp.broadcast_to(b1_ref[...], (B, H))
    b2 = jnp.broadcast_to(b2_ref[...], (B, F))

    # g-gate lane mask (lanes [2H, 3H)) -- hoisted, reused by encoder & decoder
    lane = jax.lax.broadcasted_iota(jnp.int32, (B, H4), 1)
    g_mask = jnp.logical_and(lane >= 2 * H, lane < 3 * H)

    # ---- encoder: ONE packed input projection for all T steps, time-major rows,
    #      bias folded in with a single hoisted add ----
    x2 = x_ref[...].astype(jnp.bfloat16)                               # (T*B, F)
    xg = (jnp.dot(x2, ewih, preferred_element_type=jnp.float32)
          + jnp.broadcast_to(eb, (T * B, H4)))                         # (T*B, 4H)

    # serial recurrence: ONE packed h @ W_hh matmul + ONE sigmoid + ONE tanh per step.
    # T is small & static, so the fully-unrolled Python loop is fine; for large T
    # switch to lax.fori_loop(..., unroll=k) to bound live ranges.
    h = jnp.zeros((B, H), jnp.float32)
    c = jnp.zeros((B, H), jnp.float32)
    for t in range(T):
        hb = h.astype(jnp.bfloat16)
        gates = (xg[t * B:(t + 1) * B, :]
                 + jnp.dot(hb, ewhh, preferred_element_type=jnp.float32))   # (B, 4H)
        act = jnp.where(g_mask, jnp.tanh(gates), jax.nn.sigmoid(gates))
        i = act[:, 0:H]
        f = act[:, H:2 * H]
        g = act[:, 2 * H:3 * H]
        o = act[:, 3 * H:4 * H]
        c = f * c + i * g
        h = o * jnp.tanh(c)

    # ---- decoder + MLP head: n_steps autoregressive steps ----
    # dec_lstm is called with fresh zero (h, c) every step and seq length 1, so the
    # W_hh term is identically zero (its bias b_hh is folded into db) and the
    # forget-gate term f * c0 vanishes (f lanes are dead padding in the packed result).
    e = h
    for s in range(n_steps):
        e16 = e.astype(jnp.bfloat16)
        gates = jnp.dot(e16, dwih, preferred_element_type=jnp.float32) + db_b  # (B, 4H)
        act = jnp.where(g_mask, jnp.tanh(gates), jax.nn.sigmoid(gates))
        i = act[:, 0:H]
        g = act[:, 2 * H:3 * H]
        o = act[:, 3 * H:4 * H]
        cdec = i * g
        hdec = o * jnp.tanh(cdec)
        z = jnp.maximum(
            jnp.dot(hdec.astype(jnp.bfloat16), w1, preferred_element_type=jnp.float32) + b1,
            0.0)
        y = jnp.dot(z.astype(jnp.bfloat16), w2, preferred_element_type=jnp.float32) + b2
        out_ref[:, s * F:(s + 1) * F] = y       # direct slice store, no concatenate
        e = hdec                                # autoregress on the decoder hidden


def autoreg_lstm_forward(x_tuple, params, output_sequence_length):
    x, _ = x_tuple                                  # forward(): x, _ = x
    B, T, F = x.shape
    H = params["w1"].shape[0]
    # time-major packed rows for the single big input-projection matmul:
    # row t*B + b corresponds to (batch b, time t).
    x_tm = jnp.transpose(x, (1, 0, 2)).reshape(T * B, F)
    kern = functools.partial(_autoreg_lstm_kernel, batch=B, seq_len=T, hidden=H,
                             n_steps=output_sequence_length)
    out2d = pl.pallas_call(
        kern,
        out_shape=jax.ShapeDtypeStruct((B, output_sequence_length * F), jnp.float32),
        # no grid / BlockSpecs: every operand is a single whole-array VMEM block
        compiler_params=pltpu.CompilerParams(vmem_limit_bytes=32 * 1024 * 1024),
    )(x_tm, params["enc_wih"], params["enc_whh"], params["enc_b"],
      params["dec_wih"], params["dec_b"],
      params["w1"], params["b1"], params["w2"], params["b2"])
    return out2d.reshape(B, output_sequence_length, F)


# --------------------------------- parameter setup ---------------------------------
def init_params(key, ts_features, hidden):
    """Deterministic synthetic parameters, PyTorch-style U(-1/sqrt(H), 1/sqrt(H)).

    LSTM weights are stored gate-PACKED along lanes ([in, 4H], gate order i|f|g|o,
    pre-transposed to [in, H] per gate) and in bf16 for MXU-native matmuls; biases
    stay f32.
    """
    k = 1.0 / math.sqrt(hidden)
    keys = jax.random.split(key, 12)
    u = lambda kk, shape: jax.random.uniform(kk, shape, jnp.float32, -k, k)
    bf = lambda a: a.astype(jnp.bfloat16)
    H4 = 4 * hidden
    return {
        # encoder LSTM (packed gates along lanes: i | f | g | o)
        "enc_wih": bf(u(keys[0], (ts_features, H4))),
        "enc_whh": bf(u(keys[1], (hidden, H4))),
        "enc_b":   u(keys[2], (1, H4)) + u(keys[3], (1, H4)),   # b_ih + b_hh
        # decoder LSTM
        "dec_wih": bf(u(keys[4], (hidden, H4))),
        "dec_b":   u(keys[5], (1, H4)) + u(keys[6], (1, H4)),
        # MLP head (assumed Linear(H,H) -> ReLU -> Linear(H,F))
        "w1": bf(u(keys[7], (hidden, hidden))),
        "b1": u(keys[8], (1, hidden)),
        "w2": bf(u(keys[9], (hidden, ts_features))),
        "b2": u(keys[10], (1, ts_features)),
    }


# --------------------------------- pure-JAX reference ---------------------------------
def _ref_forward(x_tuple, p, n_steps):
    """Per-gate (unpacked) reference; independently validates the packed-gate kernel."""
    x, _ = x_tuple
    B, T, F = x.shape
    H = p["w1"].shape[0]

    def gate(w, k):   # slice gate k out of a lane-packed weight / bias
        return w[:, k * H:(k + 1) * H]

    def dotf(a, w):   # same bf16-in / f32-accumulate convention as the kernel
        return jnp.dot(a.astype(jnp.bfloat16), w, preferred_element_type=jnp.float32)

    h = jnp.zeros((B, H), jnp.float32)
    c = jnp.zeros((B, H), jnp.float32)
    for t in range(T):
        xt = x[:, t]
        gi = dotf(xt, gate(p["enc_wih"], 0)) + dotf(h, gate(p["enc_whh"], 0)) + gate(p["enc_b"], 0)
        gf = dotf(xt, gate(p["enc_wih"], 1)) + dotf(h, gate(p["enc_whh"], 1)) + gate(p["enc_b"], 1)
        gg = dotf(xt, gate(p["enc_wih"], 2)) + dotf(h, gate(p["enc_whh"], 2)) + gate(p["enc_b"], 2)
        go = dotf(xt, gate(p["enc_wih"], 3)) + dotf(h, gate(p["enc_whh"], 3)) + gate(p["enc_b"], 3)
        i, f = jax.nn.sigmoid(gi), jax.nn.sigmoid(gf)
        g, o = jnp.tanh(gg), jax.nn.sigmoid(go)
        c = f * c + i * g
        h = o * jnp.tanh(c)

    e = h
    outs = []
    for _ in range(n_steps):
        gi = dotf(e, gate(p["dec_wih"], 0)) + gate(p["dec_b"], 0)
        gg = dotf(e, gate(p["dec_wih"], 2)) + gate(p["dec_b"], 2)
        go = dotf(e, gate(p["dec_wih"], 3)) + gate(p["dec_b"], 3)
        cdec = jax.nn.sigmoid(gi) * jnp.tanh(gg)
        hdec = jax.nn.sigmoid(go) * jnp.tanh(cdec)
        z = jnp.maximum(dotf(hdec, p["w1"]) + p["b1"], 0.0)
        y = dotf(z, p["w2"]) + p["b2"]
        outs.append(y[:, None, :])
        e = hdec
    return jnp.concatenate(outs, axis=1)


# --------------------------------------- main ---------------------------------------
if __name__ == "__main__":
    B, T, F, H, S_OUT = 2, 8, 4, 32, 3

    key = jax.random.PRNGKey(0)
    kx, kp = jax.random.split(key)
    x = jax.random.normal(kx, (B, T, F), jnp.float32)
    params = init_params(kp, ts_features=F, hidden=H)

    # AutoregLstm.forward receives a tuple and drops the second element.
    x_tuple = (x, None)

    out = autoreg_lstm_forward(x_tuple, params, S_OUT)
    out = jax.block_until_ready(out)

    ref = _ref_forward(x_tuple, params, S_OUT)
    assert out.shape == (B, S_OUT, F), out.shape
    assert jnp.allclose(out, ref, atol=2e-3, rtol=2e-3), "mismatch vs pure-JAX reference"

    print("KERNEL_OK")
</pallas_src>

<mosaic_0001>
module attributes {stable_mosaic.version = 11 : i64} {
  func.func @_autoreg_lstm_kernel(%arg0: memref<16x4xf32, #tpu.memory_space<vmem>>, %arg1: memref<4x128xbf16, #tpu.memory_space<vmem>>, %arg2: memref<32x128xbf16, #tpu.memory_space<vmem>>, %arg3: memref<1x128xf32, #tpu.memory_space<vmem>>, %arg4: memref<32x128xbf16, #tpu.memory_space<vmem>>, %arg5: memref<1x128xf32, #tpu.memory_space<vmem>>, %arg6: memref<32x32xbf16, #tpu.memory_space<vmem>>, %arg7: memref<1x32xf32, #tpu.memory_space<vmem>>, %arg8: memref<32x4xbf16, #tpu.memory_space<vmem>>, %arg9: memref<1x4xf32, #tpu.memory_space<vmem>>, %arg10: memref<2x12xf32, #tpu.memory_space<vmem>>) attributes {dimension_semantics = [], scalar_prefetch = 0 : i64, scratch_operands = 0 : i64, tpu.core_type = #tpu.core_type<tc>} {
    %c0 = arith.constant 0 : index
    %c0_0 = arith.constant 0 : index
    %0 = vector.load %arg1[%c0, %c0_0] : memref<4x128xbf16, #tpu.memory_space<vmem>>, vector<4x128xbf16>
    %c0_1 = arith.constant 0 : index
    %c0_2 = arith.constant 0 : index
    %1 = vector.load %arg2[%c0_1, %c0_2] : memref<32x128xbf16, #tpu.memory_space<vmem>>, vector<32x128xbf16>
    %c0_3 = arith.constant 0 : index
    %c0_4 = arith.constant 0 : index
    %2 = vector.load %arg3[%c0_3, %c0_4] : memref<1x128xf32, #tpu.memory_space<vmem>>, vector<1x128xf32>
    %c0_5 = arith.constant 0 : index
    %c0_6 = arith.constant 0 : index
    %3 = vector.load %arg4[%c0_5, %c0_6] : memref<32x128xbf16, #tpu.memory_space<vmem>>, vector<32x128xbf16>
    %c0_7 = arith.constant 0 : index
    %c0_8 = arith.constant 0 : index
    %4 = vector.load %arg6[%c0_7, %c0_8] : memref<32x32xbf16, #tpu.memory_space<vmem>>, vector<32x32xbf16>
    %c0_9 = arith.constant 0 : index
    %c0_10 = arith.constant 0 : index
    %5 = vector.load %arg8[%c0_9, %c0_10] : memref<32x4xbf16, #tpu.memory_space<vmem>>, vector<32x4xbf16>
    %c0_11 = arith.constant 0 : index
    %c0_12 = arith.constant 0 : index
    %6 = vector.load %arg5[%c0_11, %c0_12] : memref<1x128xf32, #tpu.memory_space<vmem>>, vector<1x128xf32>
    %7 = vector.shape_cast %6 : vector<1x128xf32> to vector<1x128xf32>
    %8 = vector.broadcast %7 : vector<1x128xf32> to vector<2x128xf32>
    %c0_13 = arith.constant 0 : index
    %c0_14 = arith.constant 0 : index
    %9 = vector.load %arg7[%c0_13, %c0_14] : memref<1x32xf32, #tpu.memory_space<vmem>>, vector<1x32xf32>
    %10 = vector.shape_cast %9 : vector<1x32xf32> to vector<1x32xf32>
    %11 = vector.broadcast %10 : vector<1x32xf32> to vector<2x32xf32>
    %c0_15 = arith.constant 0 : index
    %c0_16 = arith.constant 0 : index
    %12 = vector.load %arg9[%c0_15, %c0_16] : memref<1x4xf32, #tpu.memory_space<vmem>>, vector<1x4xf32>
    %13 = vector.shape_cast %12 : vector<1x4xf32> to vector<1x4xf32>
    %14 = vector.broadcast %13 : vector<1x4xf32> to vector<2x4xf32>
    %15 = tpu.iota {dimensions = array<i32: 1>} : vector<2x128xi32>
    %c64_i32 = arith.constant 64 : i32
    %16 = vector.broadcast %c64_i32 : i32 to vector<2x128xi32>
    %17 = arith.cmpi sge, %15, %16 : vector<2x128xi32>
    %c96_i32 = arith.constant 96 : i32
    %18 = vector.broadcast %c96_i32 : i32 to vector<2x128xi32>
    %19 = arith.cmpi slt, %15, %18 : vector<2x128xi32>
    %20 = arith.andi %17, %19 : vector<2x128xi1>
    %c0_17 = arith.constant 0 : index
    %c0_18 = arith.constant 0 : index
    %21 = vector.load %arg0[%c0_17, %c0_18] : memref<16x4xf32, #tpu.memory_space<vmem>>, vector<16x4xf32>
    %22 = arith.truncf %21 : vector<16x4xf32> to vector<16x4xbf16>
    %cst = arith.constant dense<0.000000e+00> : vector<16x128xf32>
    %23 = tpu.matmul %22, %0, %cst {dimension_numbers = #tpu.dot_dimension_numbers<[1], [0], [0], [1], [0, 0, 1, 1], [], []>} : vector<16x4xbf16>, vector<4x128xbf16>, vector<16x128xf32> -> vector<16x128xf32>
    %24 = vector.shape_cast %2 : vector<1x128xf32> to vector<1x128xf32>
    %25 = vector.broadcast %24 : vector<1x128xf32> to vector<16x128xf32>
    %26 = arith.addf %23, %25 : vector<16x128xf32>
    %cst_19 = arith.constant 0.000000e+00 : f32
    %27 = vector.broadcast %cst_19 : f32 to vector<2x32xf32>
    %cst_20 = arith.constant 0.000000e+00 : f32
    %28 = vector.broadcast %cst_20 : f32 to vector<2x32xf32>
    %29 = arith.truncf %27 : vector<2x32xf32> to vector<2x32xbf16>
    %30 = vector.extract_strided_slice %26 {offsets = [0, 0], sizes = [2, 128], strides = [1, 1]} : vector<16x128xf32> to vector<2x128xf32>
    %cst_21 = arith.constant dense<0.000000e+00> : vector<2x128xf32>
    %31 = tpu.matmul %29, %1, %cst_21 {dimension_numbers = #tpu.dot_dimension_numbers<[1], [0], [0], [1], [0, 0, 1, 1], [], []>} : vector<2x32xbf16>, vector<32x128xbf16>, vector<2x128xf32> -> vector<2x128xf32>
    %32 = arith.addf %30, %31 : vector<2x128xf32>
    %33 = math.tanh %32 : vector<2x128xf32>
    %34 = arith.negf %32 : vector<2x128xf32>
    %35 = math.exp %34 : vector<2x128xf32>
    %cst_22 = arith.constant 1.000000e+00 : f32
    %36 = vector.broadcast %cst_22 : f32 to vector<2x128xf32>
    %37 = arith.addf %36, %35 : vector<2x128xf32>
    %38 = arith.divf %36, %37 : vector<2x128xf32>
    %39 = arith.select %20, %33, %38 : vector<2x128xi1>, vector<2x128xf32>
    %40 = vector.extract_strided_slice %39 {offsets = [0, 0], sizes = [2, 32], strides = [1, 1]} : vector<2x128xf32> to vector<2x32xf32>
    %41 = vector.extract_strided_slice %39 {offsets = [0, 32], sizes = [2, 32], strides = [1, 1]} : vector<2x128xf32> to vector<2x32xf32>
    %42 = vector.extract_strided_slice %39 {offsets = [0, 64], sizes = [2, 32], strides = [1, 1]} : vector<2x128xf32> to vector<2x32xf32>
    %43 = vector.extract_strided_slice %39 {offsets = [0, 96], sizes = [2, 32], strides = [1, 1]} : vector<2x128xf32> to vector<2x32xf32>
    %44 = arith.mulf %41, %28 : vector<2x32xf32>
    %45 = arith.mulf %40, %42 : vector<2x32xf32>
    %46 = arith.addf %44, %45 : vector<2x32xf32>
    %47 = math.tanh %46 : vector<2x32xf32>
    %48 = arith.mulf %43, %47 : vector<2x32xf32>
    %49 = arith.truncf %48 : vector<2x32xf32> to vector<2x32xbf16>
    %50 = vector.extract_strided_slice %26 {offsets = [2, 0], sizes = [2, 128], strides = [1, 1]} : vector<16x128xf32> to vector<2x128xf32>
    %cst_23 = arith.constant dense<0.000000e+00> : vector<2x128xf32>
    %51 = tpu.matmul %49, %1, %cst_23 {dimension_numbers = #tpu.dot_dimension_numbers<[1], [0], [0], [1], [0, 0, 1, 1], [], []>} : vector<2x32xbf16>, vector<32x128xbf16>, vector<2x128xf32> -> vector<2x128xf32>
    %52 = arith.addf %50, %51 : vector<2x128xf32>
    %53 = math.tanh %52 : vector<2x128xf32>
    %54 = arith.negf %52 : vector<2x128xf32>
    %55 = math.exp %54 : vector<2x128xf32>
    %cst_24 = arith.constant 1.000000e+00 : f32
    %56 = vector.broadcast %cst_24 : f32 to vector<2x128xf32>
    %57 = arith.addf %56, %55 : vector<2x128xf32>
    %58 = arith.divf %56, %57 : vector<2x128xf32>
    %59 = arith.select %20, %53, %58 : vector<2x128xi1>, vector<2x128xf32>
    %60 = vector.extract_strided_slice %59 {offsets = [0, 0], sizes = [2, 32], strides = [1, 1]} : vector<2x128xf32> to vector<2x32xf32>
    %61 = vector.extract_strided_slice %59 {offsets = [0, 32], sizes = [2, 32], strides = [1, 1]} : vector<2x128xf32> to vector<2x32xf32>
    %62 = vector.extract_strided_slice %59 {offsets = [0, 64], sizes = [2, 32], strides = [1, 1]} : vector<2x128xf32> to vector<2x32xf32>
    %63 = vector.extract_strided_slice %59 {offsets = [0, 96], sizes = [2, 32], strides = [1, 1]} : vector<2x128xf32> to vector<2x32xf32>
    %64 = arith.mulf %61, %46 : vector<2x32xf32>
    %65 = arith.mulf %60, %62 : vector<2x32xf32>
    %66 = arith.addf %64, %65 : vector<2x32xf32>
    %67 = math.tanh %66 : vector<2x32xf32>
    %68 = arith.mulf %63, %67 : vector<2x32xf32>
    %69 = arith.truncf %68 : vector<2x32xf32> to vector<2x32xbf16>
    %70 = vector.extract_strided_slice %26 {offsets = [4, 0], sizes = [2, 128], strides = [1, 1]} : vector<16x128xf32> to vector<2x128xf32>
    %cst_25 = arith.constant dense<0.000000e+00> : vector<2x128xf32>
    %71 = tpu.matmul %69, %1, %cst_25 {dimension_numbers = #tpu.dot_dimension_numbers<[1], [0], [0], [1], [0, 0, 1, 1], [], []>} : vector<2x32xbf16>, vector<32x128xbf16>, vector<2x128xf32> -> vector<2x128xf32>
    %72 = arith.addf %70, %71 : vector<2x128xf32>
    %73 = math.tanh %72 : vector<2x128xf32>
    %74 = arith.negf %72 : vector<2x128xf32>
    %75 = math.exp %74 : vector<2x128xf32>
    %cst_26 = arith.constant 1.000000e+00 : f32
    %76 = vector.broadcast %cst_26 : f32 to vector<2x128xf32>
    %77 = arith.addf %76, %75 : vector<2x128xf32>
    %78 = arith.divf %76, %77 : vector<2x128xf32>
    %79 = arith.select %20, %73, %78 : vector<2x128xi1>, vector<2x128xf32>
    %80 = vector.extract_strided_slice %79 {offsets = [0, 0], sizes = [2, 32], strides = [1, 1]} : vector<2x128xf32> to vector<2x32xf32>
    %81 = vector.extract_strided_slice %79 {offsets = [0, 32], sizes = [2, 32], strides = [1, 1]} : vector<2x128xf32> to vector<2x32xf32>
    %82 = vector.extract_strided_slice %79 {offsets = [0, 64], sizes = [2, 32], strides = [1, 1]} : vector<2x128xf32> to vector<2x32xf32>
    %83 = vector.extract_strided_slice %79 {offsets = [0, 96], sizes = [2, 32], strides = [1, 1]} : vector<2x128xf32> to vector<2x32xf32>
    %84 = arith.mulf %81, %66 : vector<2x32xf32>
    %85 = arith.mulf %80, %82 : vector<2x32xf32>
    %86 = arith.addf %84, %85 : vector<2x32xf32>
    %87 = math.tanh %86 : vector<2x32xf32>
    %88 = arith.mulf %83, %87 : vector<2x32xf32>
    %89 = arith.truncf %88 : vector<2x32xf32> to vector<2x32xbf16>
    %90 = vector.extract_strided_slice %26 {offsets = [6, 0], sizes = [2, 128], strides = [1, 1]} : vector<16x128xf32> to vector<2x128xf32>
    %cst_27 = arith.constant dense<0.000000e+00> : vector<2x128xf32>
    %91 = tpu.matmul %89, %1, %cst_27 {dimension_numbers = #tpu.dot_dimension_numbers<[1], [0], [0], [1], [0, 0, 1, 1], [], []>} : vector<2x32xbf16>, vector<32x128xbf16>, vector<2x128xf32> -> vector<2x128xf32>
    %92 = arith.addf %90, %91 : vector<2x128xf32>
    %93 = math.tanh %92 : vector<2x128xf32>
    %94 = arith.negf %92 : vector<2x128xf32>
    %95 = math.exp %94 : vector<2x128xf32>
    %cst_28 = arith.constant 1.000000e+00 : f32
    %96 = vector.broadcast %cst_28 : f32 to vector<2x128xf32>
    %97 = arith.addf %96, %95 : vector<2x128xf32>
    %98 = arith.divf %96, %97 : vector<2x128xf32>
    %99 = arith.select %20, %93, %98 : vector<2x128xi1>, vector<2x128xf32>
    %100 = vector.extract_strided_slice %99 {offsets = [0, 0], sizes = [2, 32], strides = [1, 1]} : vector<2x128xf32> to vector<2x32xf32>
    %101 = vector.extract_strided_slice %99 {offsets = [0, 32], sizes = [2, 32], strides = [1, 1]} : vector<2x128xf32> to vector<2x32xf32>
    %102 = vector.extract_strided_slice %99 {offsets = [0, 64], sizes = [2, 32], strides = [1, 1]} : vector<2x128xf32> to vector<2x32xf32>
    %103 = vector.extract_strided_slice %99 {offsets = [0, 96], sizes = [2, 32], strides = [1, 1]} : vector<2x128xf32> to vector<2x32xf32>
    %104 = arith.mulf %101, %86 : vector<2x32xf32>
    %105 = arith.mulf %100, %102 : vector<2x32xf32>
    %106 = arith.addf %104, %105 : vector<2x32xf32>
    %107 = math.tanh %106 : vector<2x32xf32>
    %108 = arith.mulf %103, %107 : vector<2x32xf32>
    %109 = arith.truncf %108 : vector<2x32xf32> to vector<2x32xbf16>
    %110 = vector.extract_strided_slice %26 {offsets = [8, 0], sizes = [2, 128], strides = [1, 1]} : vector<16x128xf32> to vector<2x128xf32>
    %cst_29 = arith.constant dense<0.000000e+00> : vector<2x128xf32>
    %111 = tpu.matmul %109, %1, %cst_29 {dimension_numbers = #tpu.dot_dimension_numbers<[1], [0], [0], [1], [0, 0, 1, 1], [], []>} : vector<2x32xbf16>, vector<32x128xbf16>, vector<2x128xf32> -> vector<2x128xf32>
    %112 = arith.addf %110, %111 : vector<2x128xf32>
    %113 = math.tanh %112 : vector<2x128xf32>
    %114 = arith.negf %112 : vector<2x128xf32>
    %115 = math.exp %114 : vector<2x128xf32>
    %cst_30 = arith.constant 1.000000e+00 : f32
    %116 = vector.broadcast %cst_30 : f32 to vector<2x128xf32>
    %117 = arith.addf %116, %115 : vector<2x128xf32>
    %118 = arith.divf %116, %117 : vector<2x128xf32>
    %119 = arith.select %20, %113, %118 : vector<2x128xi1>, vector<2x128xf32>
    %120 = vector.extract_strided_slice %119 {offsets = [0, 0], sizes = [2, 32], strides = [1, 1]} : vector<2x128xf32> to vector<2x32xf32>
    %121 = vector.extract_strided_slice %119 {offsets = [0, 32], sizes = [2, 32], strides = [1, 1]} : vector<2x128xf32> to vector<2x32xf32>
    %122 = vector.extract_strided_slice %119 {offsets = [0, 64], sizes = [2, 32], strides = [1, 1]} : vector<2x128xf32> to vector<2x32xf32>
    %123 = vector.extract_strided_slice %119 {offsets = [0, 96], sizes = [2, 32], strides = [1, 1]} : vector<2x128xf32> to vector<2x32xf32>
    %124 = arith.mulf %121, %106 : vector<2x32xf32>
    %125 = arith.mulf %120, %122 : vector<2x32xf32>
    %126 = arith.addf %124, %125 : vector<2x32xf32>
    %127 = math.tanh %126 : vector<2x32xf32>
    %128 = arith.mulf %123, %127 : vector<2x32xf32>
    %129 = arith.truncf %128 : vector<2x32xf32> to vector<2x32xbf16>
    %130 = vector.extract_strided_slice %26 {offsets = [10, 0], sizes = [2, 128], strides = [1, 1]} : vector<16x128xf32> to vector<2x128xf32>
    %cst_31 = arith.constant dense<0.000000e+00> : vector<2x128xf32>
    %131 = tpu.matmul %129, %1, %cst_31 {dimension_numbers = #tpu.dot_dimension_numbers<[1], [0], [0], [1], [0, 0, 1, 1], [], []>} : vector<2x32xbf16>, vector<32x128xbf16>, vector<2x128xf32> -> vector<2x128xf32>
    %132 = arith.addf %130, %131 : vector<2x128xf32>
    %133 = math.tanh %132 : vector<2x128xf32>
    %134 = arith.negf %132 : vector<2x128xf32>
    %135 = math.exp %134 : vector<2x128xf32>
    %cst_32 = arith.constant 1.000000e+00 : f32
    %136 = vector.broadcast %cst_32 : f32 to vector<2x128xf32>
    %137 = arith.addf %136, %135 : vector<2x128xf32>
    %138 = arith.divf %136, %137 : vector<2x128xf32>
    %139 = arith.select %20, %133, %138 : vector<2x128xi1>, vector<2x128xf32>
    %140 = vector.extract_strided_slice %139 {offsets = [0, 0], sizes = [2, 32], strides = [1, 1]} : vector<2x128xf32> to vector<2x32xf32>
    %141 = vector.extract_strided_slice %139 {offsets = [0, 32], sizes = [2, 32], strides = [1, 1]} : vector<2x128xf32> to vector<2x32xf32>
    %142 = vector.extract_strided_slice %139 {offsets = [0, 64], sizes = [2, 32], strides = [1, 1]} : vector<2x128xf32> to vector<2x32xf32>
    %143 = vector.extract_strided_slice %139 {offsets = [0, 96], sizes = [2, 32], strides = [1, 1]} : vector<2x128xf32> to vector<2x32xf32>
    %144 = arith.mulf %141, %126 : vector<2x32xf32>
    %145 = arith.mulf %140, %142 : vector<2x32xf32>
    %146 = arith.addf %144, %145 : vector<2x32xf32>
    %147 = math.tanh %146 : vector<2x32xf32>
    %148 = arith.mulf %143, %147 : vector<2x32xf32>
    %149 = arith.truncf %148 : vector<2x32xf32> to vector<2x32xbf16>
    %150 = vector.extract_strided_slice %26 {offsets = [12, 0], sizes = [2, 128], strides = [1, 1]} : vector<16x128xf32> to vector<2x128xf32>
    %cst_33 = arith.constant dense<0.000000e+00> : vector<2x128xf32>
    %151 = tpu.matmul %149, %1, %cst_33 {dimension_numbers = #tpu.dot_dimension_numbers<[1], [0], [0], [1], [0, 0, 1, 1], [], []>} : vector<2x32xbf16>, vector<32x128xbf16>, vector<2x128xf32> -> vector<2x128xf32>
    %152 = arith.addf %150, %151 : vector<2x128xf32>
    %153 = math.tanh %152 : vector<2x128xf32>
    %154 = arith.negf %152 : vector<2x128xf32>
    %155 = math.exp %154 : vector<2x128xf32>
    %cst_34 = arith.constant 1.000000e+00 : f32
    %156 = vector.broadcast %cst_34 : f32 to vector<2x128xf32>
    %157 = arith.addf %156, %155 : vector<2x128xf32>
    %158 = arith.divf %156, %157 : vector<2x128xf32>
    %159 = arith.select %20, %153, %158 : vector<2x128xi1>, vector<2x128xf32>
    %160 = vector.extract_strided_slice %159 {offsets = [0, 0], sizes = [2, 32], strides = [1, 1]} : vector<2x128xf32> to vector<2x32xf32>
    %161 = vector.extract_strided_slice %159 {offsets = [0, 32], sizes = [2, 32], strides = [1, 1]} : vector<2x128xf32> to vector<2x32xf32>
    %162 = vector.extract_strided_slice %159 {offsets = [0, 64], sizes = [2, 32], strides = [1, 1]} : vector<2x128xf32> to vector<2x32xf32>
    %163 = vector.extract_strided_slice %159 {offsets = [0, 96], sizes = [2, 32], strides = [1, 1]} : vector<2x128xf32> to vector<2x32xf32>
    %164 = arith.mulf %161, %146 : vector<2x32xf32>
    %165 = arith.mulf %160, %162 : vector<2x32xf32>
    %166 = arith.addf %164, %165 : vector<2x32xf32>
    %167 = math.tanh %166 : vector<2x32xf32>
    %168 = arith.mulf %163, %167 : vector<2x32xf32>
    %169 = arith.truncf %168 : vector<2x32xf32> to vector<2x32xbf16>
    %170 = vector.extract_strided_slice %26 {offsets = [14, 0], sizes = [2, 128], strides = [1, 1]} : vector<16x128xf32> to vector<2x128xf32>
    %cst_35 = arith.constant dense<0.000000e+00> : vector<2x128xf32>
    %171 = tpu.matmul %169, %1, %cst_35 {dimension_numbers = #tpu.dot_dimension_numbers<[1], [0], [0], [1], [0, 0, 1, 1], [], []>} : vector<2x32xbf16>, vector<32x128xbf16>, vector<2x128xf32> -> vector<2x128xf32>
    %172 = arith.addf %170, %171 : vector<2x128xf32>
    %173 = math.tanh %172 : vector<2x128xf32>
    %174 = arith.negf %172 : vector<2x128xf32>
    %175 = math.exp %174 : vector<2x128xf32>
    %cst_36 = arith.constant 1.000000e+00 : f32
    %176 = vector.broadcast %cst_36 : f32 to vector<2x128xf32>
    %177 = arith.addf %176, %175 : vector<2x128xf32>
    %178 = arith.divf %176, %177 : vector<2x128xf32>
    %179 = arith.select %20, %173, %178 : vector<2x128xi1>, vector<2x128xf32>
    %180 = vector.extract_strided_slice %179 {offsets = [0, 0], sizes = [2, 32], strides = [1, 1]} : vector<2x128xf32> to vector<2x32xf32>
    %181 = vector.extract_strided_slice %179 {offsets = [0, 32], sizes = [2, 32], strides = [1, 1]} : vector<2x128xf32> to vector<2x32xf32>
    %182 = vector.extract_strided_slice %179 {offsets = [0, 64], sizes = [2, 32], strides = [1, 1]} : vector<2x128xf32> to vector<2x32xf32>
    %183 = vector.extract_strided_slice %179 {offsets = [0, 96], sizes = [2, 32], strides = [1, 1]} : vector<2x128xf32> to vector<2x32xf32>
    %184 = arith.mulf %181, %166 : vector<2x32xf32>
    %185 = arith.mulf %180, %182 : vector<2x32xf32>
    %186 = arith.addf %184, %185 : vector<2x32xf32>
    %187 = math.tanh %186 : vector<2x32xf32>
    %188 = arith.mulf %183, %187 : vector<2x32xf32>
    %189 = arith.truncf %188 : vector<2x32xf32> to vector<2x32xbf16>
    %cst_37 = arith.constant dense<0.000000e+00> : vector<2x128xf32>
    %190 = tpu.matmul %189, %3, %cst_37 {dimension_numbers = #tpu.dot_dimension_numbers<[1], [0], [0], [1], [0, 0, 1, 1], [], []>} : vector<2x32xbf16>, vector<32x128xbf16>, vector<2x128xf32> -> vector<2x128xf32>
    %191 = arith.addf %190, %8 : vector<2x128xf32>
    %192 = math.tanh %191 : vector<2x128xf32>
    %193 = arith.negf %191 : vector<2x128xf32>
    %194 = math.exp %193 : vector<2x128xf32>
    %cst_38 = arith.constant 1.000000e+00 : f32
    %195 = vector.broadcast %cst_38 : f32 to vector<2x128xf32>
    %196 = arith.addf %195, %194 : vector<2x128xf32>
    %197 = arith.divf %195, %196 : vector<2x128xf32>
    %198 = arith.select %20, %192, %197 : vector<2x128xi1>, vector<2x128xf32>
    %199 = vector.extract_strided_slice %198 {offsets = [0, 0], sizes = [2, 32], strides = [1, 1]} : vector<2x128xf32> to vector<2x32xf32>
    %200 = vector.extract_strided_slice %198 {offsets = [0, 64], sizes = [2, 32], strides = [1, 1]} : vector<2x128xf32> to vector<2x32xf32>
    %201 = vector.extract_strided_slice %198 {offsets = [0, 96], sizes = [2, 32], strides = [1, 1]} : vector<2x128xf32> to vector<2x32xf32>
    %202 = arith.mulf %199, %200 : vector<2x32xf32>
    %203 = math.tanh %202 : vector<2x32xf32>
    %204 = arith.mulf %201, %203 : vector<2x32xf32>
    %205 = arith.truncf %204 : vector<2x32xf32> to vector<2x32xbf16>
    %cst_39 = arith.constant dense<0.000000e+00> : vector<2x32xf32>
    %206 = tpu.matmul %205, %4, %cst_39 {dimension_numbers = #tpu.dot_dimension_numbers<[1], [0], [0], [1], [0, 0, 1, 1], [], []>} : vector<2x32xbf16>, vector<32x32xbf16>, vector<2x32xf32> -> vector<2x32xf32>
    %207 = arith.addf %206, %11 : vector<2x32xf32>
    %cst_40 = arith.constant 0.000000e+00 : f32
    %208 = vector.broadcast %cst_40 : f32 to vector<2x32xf32>
    %209 = arith.maximumf %207, %208 : vector<2x32xf32>
    %210 = arith.truncf %209 : vector<2x32xf32> to vector<2x32xbf16>
    %cst_41 = arith.constant dense<0.000000e+00> : vector<2x4xf32>
    %211 = tpu.matmul %210, %5, %cst_41 {dimension_numbers = #tpu.dot_dimension_numbers<[1], [0], [0], [1], [0, 0, 1, 1], [], []>} : vector<2x32xbf16>, vector<32x4xbf16>, vector<2x4xf32> -> vector<2x4xf32>
    %212 = arith.addf %211, %14 : vector<2x4xf32>
    %c0_42 = arith.constant 0 : index
    %c0_43 = arith.constant 0 : index
    %213 = vector.load %arg10[%c0_42, %c0_43] : memref<2x12xf32, #tpu.memory_space<vmem>>, vector<2x4xf32>
    tpu.vector_store %arg10[%c0_42, %c0_43], %212 {strides = array<i32>} : memref<2x12xf32, #tpu.memory_space<vmem>>, vector<2x4xf32>,
    %214 = arith.truncf %204 : vector<2x32xf32> to vector<2x32xbf16>
    %cst_44 = arith.constant dense<0.000000e+00> : vector<2x128xf32>
    %215 = tpu.matmul %214, %3, %cst_44 {dimension_numbers = #tpu.dot_dimension_numbers<[1], [0], [0], [1], [0, 0, 1, 1], [], []>} : vector<2x32xbf16>, vector<32x128xbf16>, vector<2x128xf32> -> vector<2x128xf32>
    %216 = arith.addf %215, %8 : vector<2x128xf32>
    %217 = math.tanh %216 : vector<2x128xf32>
    %218 = arith.negf %216 : vector<2x128xf32>
    %219 = math.exp %218 : vector<2x128xf32>
    %cst_45 = arith.constant 1.000000e+00 : f32
    %220 = vector.broadcast %cst_45 : f32 to vector<2x128xf32>
    %221 = arith.addf %220, %219 : vector<2x128xf32>
    %222 = arith.divf %220, %221 : vector<2x128xf32>
    %223 = arith.select %20, %217, %222 : vector<2x128xi1>, vector<2x128xf32>
    %224 = vector.extract_strided_slice %223 {offsets = [0, 0], sizes = [2, 32], strides = [1, 1]} : vector<2x128xf32> to vector<2x32xf32>
    %225 = vector.extract_strided_slice %223 {offsets = [0, 64], sizes = [2, 32], strides = [1, 1]} : vector<2x128xf32> to vector<2x32xf32>
    %226 = vector.extract_strided_slice %223 {offsets = [0, 96], sizes = [2, 32], strides = [1, 1]} : vector<2x128xf32> to vector<2x32xf32>
    %227 = arith.mulf %224, %225 : vector<2x32xf32>
    %228 = math.tanh %227 : vector<2x32xf32>
    %229 = arith.mulf %226, %228 : vector<2x32xf32>
    %230 = arith.truncf %229 : vector<2x32xf32> to vector<2x32xbf16>
    %cst_46 = arith.constant dense<0.000000e+00> : vector<2x32xf32>
    %231 = tpu.matmul %230, %4, %cst_46 {dimension_numbers = #tpu.dot_dimension_numbers<[1], [0], [0], [1], [0, 0, 1, 1], [], []>} : vector<2x32xbf16>, vector<32x32xbf16>, vector<2x32xf32> -> vector<2x32xf32>
    %232 = arith.addf %231, %11 : vector<2x32xf32>
    %cst_47 = arith.constant 0.000000e+00 : f32
    %233 = vector.broadcast %cst_47 : f32 to vector<2x32xf32>
    %234 = arith.maximumf %232, %233 : vector<2x32xf32>
    %235 = arith.truncf %234 : vector<2x32xf32> to vector<2x32xbf16>
    %cst_48 = arith.constant dense<0.000000e+00> : vector<2x4xf32>
    %236 = tpu.matmul %235, %5, %cst_48 {dimension_numbers = #tpu.dot_dimension_numbers<[1], [0], [0], [1], [0, 0, 1, 1], [], []>} : vector<2x32xbf16>, vector<32x4xbf16>, vector<2x4xf32> -> vector<2x4xf32>
    %237 = arith.addf %236, %14 : vector<2x4xf32>
    %c0_49 = arith.constant 0 : index
    %c4 = arith.constant 4 : index
    %238 = vector.load %arg10[%c0_49, %c4] : memref<2x12xf32, #tpu.memory_space<vmem>>, vector<2x4xf32>
    tpu.vector_store %arg10[%c0_49, %c4], %237 {strides = array<i32>} : memref<2x12xf32, #tpu.memory_space<vmem>>, vector<2x4xf32>,
    %239 = arith.truncf %229 : vector<2x32xf32> to vector<2x32xbf16>
    %cst_50 = arith.constant dense<0.000000e+00> : vector<2x128xf32>
    %240 = tpu.matmul %239, %3, %cst_50 {dimension_numbers = #tpu.dot_dimension_numbers<[1], [0], [0], [1], [0, 0, 1, 1], [], []>} : vector<2x32xbf16>, vector<32x128xbf16>, vector<2x128xf32> -> vector<2x128xf32>
    %241 = arith.addf %240, %8 : vector<2x128xf32>
    %242 = math.tanh %241 : vector<2x128xf32>
    %243 = arith.negf %241 : vector<2x128xf32>
    %244 = math.exp %243 : vector<2x128xf32>
    %cst_51 = arith.constant 1.000000e+00 : f32
    %245 = vector.broadcast %cst_51 : f32 to vector<2x128xf32>
    %246 = arith.addf %245, %244 : vector<2x128xf32>
    %247 = arith.divf %245, %246 : vector<2x128xf32>
    %248 = arith.select %20, %242, %247 : vector<2x128xi1>, vector<2x128xf32>
    %249 = vector.extract_strided_slice %248 {offsets = [0, 0], sizes = [2, 32], strides = [1, 1]} : vector<2x128xf32> to vector<2x32xf32>
    %250 = vector.extract_strided_slice %248 {offsets = [0, 64], sizes = [2, 32], strides = [1, 1]} : vector<2x128xf32> to vector<2x32xf32>
    %251 = vector.extract_strided_slice %248 {offsets = [0, 96], sizes = [2, 32], strides = [1, 1]} : vector<2x128xf32> to vector<2x32xf32>
    %252 = arith.mulf %249, %250 : vector<2x32xf32>
    %253 = math.tanh %252 : vector<2x32xf32>
    %254 = arith.mulf %251, %253 : vector<2x32xf32>
    %255 = arith.truncf %254 : vector<2x32xf32> to vector<2x32xbf16>
    %cst_52 = arith.constant dense<0.000000e+00> : vector<2x32xf32>
    %256 = tpu.matmul %255, %4, %cst_52 {dimension_numbers = #tpu.dot_dimension_numbers<[1], [0], [0], [1], [0, 0, 1, 1], [], []>} : vector<2x32xbf16>, vector<32x32xbf16>, vector<2x32xf32> -> vector<2x32xf32>
    %257 = arith.addf %256, %11 : vector<2x32xf32>
    %cst_53 = arith.constant 0.000000e+00 : f32
    %258 = vector.broadcast %cst_53 : f32 to vector<2x32xf32>
    %259 = arith.maximumf %257, %258 : vector<2x32xf32>
    %260 = arith.truncf %259 : vector<2x32xf32> to vector<2x32xbf16>
    %cst_54 = arith.constant dense<0.000000e+00> : vector<2x4xf32>
    %261 = tpu.matmul %260, %5, %cst_54 {dimension_numbers = #tpu.dot_dimension_numbers<[1], [0], [0], [1], [0, 0, 1, 1], [], []>} : vector<2x32xbf16>, vector<32x4xbf16>, vector<2x4xf32> -> vector<2x4xf32>
    %262 = arith.addf %261, %14 : vector<2x4xf32>
    %c0_55 = arith.constant 0 : index
    %c8 = arith.constant 8 : index
    %263 = vector.load %arg10[%c0_55, %c8] : memref<2x12xf32, #tpu.memory_space<vmem>>, vector<2x4xf32>
    tpu.vector_store %arg10[%c0_55, %c8], %262 {strides = array<i32>} : memref<2x12xf32, #tpu.memory_space<vmem>>, vector<2x4xf32>,
    return
  }
}

</mosaic_0001>

<llo_original>
// kernel: tpu_custom_call.1
$region0: #{tpu_custom_call.1}
  #allocation0 [shape = 'u32[]', space=smem, size = 0x4, offset = 0x4, fixed_abs, tag = 'smem constant byte address 0x4 - core index']
  #allocation1 [shape = 'u32[144,128]{1,0:T(1,128)}', space=vmem, size = 0x12000, scoped, tag = 'internal scratch']
  %s0 = inlined_call_operand.vmem [shape: f32[16,4], index: 0, kind: input, shape index: {}]
  %s1 = inlined_call_operand.hbm [shape: bf16[4,128], index: 1, kind: input, shape index: {}]
  %s2 = inlined_call_operand.vmem [shape: bf16[32,128], index: 2, kind: input, shape index: {}]
  %s3 = inlined_call_operand.vmem [shape: f32[1,128], index: 3, kind: input, shape index: {}]
  %s4 = inlined_call_operand.vmem [shape: bf16[32,128], index: 4, kind: input, shape index: {}]
  %s5 = inlined_call_operand.vmem [shape: f32[1,128], index: 5, kind: input, shape index: {}]
  %s6 = inlined_call_operand.vmem [shape: bf16[32,32], index: 6, kind: input, shape index: {}]
  %s7 = inlined_call_operand.vmem [shape: f32[1,32], index: 7, kind: input, shape index: {}]
  %s8 = inlined_call_operand.vmem [shape: bf16[32,4], index: 8, kind: input, shape index: {}]
  %s9 = inlined_call_operand.vmem [shape: f32[1,4], index: 9, kind: input, shape index: {}]
  %s10 = inlined_call_operand.hbm [shape: f32[2,12], index: 10, kind: output, shape index: {}]
  %s11 = sld [smem:[#allocation0]]
  $region54: #{tpu_custom_call.1} parent=0
    _
  %s13 = ssub.s32 1, %s11
  %s14 = scalar_select 0, %s13, %s11
  $region1: #{tpu_custom_call.1} parent=0
    #allocation2 [shape = 'u8[1024]{0}', space=vmem, size = 0x400, scoped, tag = 'input window, operand 1, single buffered']
    #allocation3 [shape = 's32[1]{0}', space=sflag, size = 0x4, scoped, tag = 'scoped memory for tpu_custom_call.1']
    #allocation4 [shape = 's32[1]{0}', space=sflag, size = 0x4, scoped, tag = 'scoped memory for tpu_custom_call.1']
    #allocation5 [shape = 'u8[1024]{0}', space=vmem, size = 0x400, scoped, tag = 'output window, operand 0, single buffered']
    %15 = vsyncpa [#allocation3], 0
    %16 = vsyncpa [#allocation4], 0
    // Predicated region
    $region2: #{tpu_custom_call.1} parent=1 // pred_check
      _
    $region3: #{tpu_custom_call.1} parent=1 // pred_check_branch
      %18 = sbr.rel (0) target = $region5
    $region4: #{tpu_custom_call.1} parent=1 // pred_region
      _
    $region5: #{tpu_custom_call.1} parent=1 // pred_fallthru
      _
    // Predicated region
    $region6: #{tpu_custom_call.1} parent=1 // pred_check
      _
    $region7: #{tpu_custom_call.1} parent=1 // pred_check_branch
      %20 = sbr.rel (0) target = $region9
    $region8: #{tpu_custom_call.1} parent=1 // pred_region
      %s22 = ssub.s32 32, 32
      %23 = vsyncadd [#allocation3], %s22
      %s25 = sshll.u32 [#allocation2], 4
      %s26 = int_to_ptr.vmem [resolvable:$true] %s25
      %28 = dma.hbm_to_vmem [thread:$0]  %s1, 32, %s26, [#allocation3]
    $region9: #{tpu_custom_call.1} parent=1 // pred_fallthru
      _
    // Predicated region
    $region10: #{tpu_custom_call.1} parent=1 // pred_check
      _
    $region11: #{tpu_custom_call.1} parent=1 // pred_check_branch
      %30 = sbr.rel (0) target = $region13
    $region12: #{tpu_custom_call.1} parent=1 // pred_region
      _
    $region13: #{tpu_custom_call.1} parent=1 // pred_fallthru
      _
    // Predicated region
    $region14: #{tpu_custom_call.1} parent=1 // pred_check
      _
    $region15: #{tpu_custom_call.1} parent=1 // pred_check_branch
      %32 = sbr.rel (0) target = $region17
    $region16: #{tpu_custom_call.1} parent=1 // pred_region
      _
    $region17: #{tpu_custom_call.1} parent=1 // pred_fallthru
      _
    // Predicated region
    $region18: #{tpu_custom_call.1} parent=1 // pred_check
      _
    $region19: #{tpu_custom_call.1} parent=1 // pred_check_branch
      %34 = sbr.rel (0) target = $region21
    $region20: #{tpu_custom_call.1} parent=1 // pred_region
      _
    $region21: #{tpu_custom_call.1} parent=1 // pred_fallthru
      _
    // Predicated region
    $region22: #{tpu_custom_call.1} parent=1 // pred_check
      _
    $region23: #{tpu_custom_call.1} parent=1 // pred_check_branch
      %36 = sbr.rel (0) target = $region25
    $region24: #{tpu_custom_call.1} parent=1 // pred_region
      _
    $region25: #{tpu_custom_call.1} parent=1 // pred_fallthru
      _
    // Predicated region
    $region26: #{tpu_custom_call.1} parent=1 // pred_check
      _
    $region27: #{tpu_custom_call.1} parent=1 // pred_check_branch
      %38 = sbr.rel (0) target = $region29
    $region28: #{tpu_custom_call.1} parent=1 // pred_region
      _
    $region29: #{tpu_custom_call.1} parent=1 // pred_fallthru
      _
    // Predicated region
    $region30: #{tpu_custom_call.1} parent=1 // pred_check
      _
    $region31: #{tpu_custom_call.1} parent=1 // pred_check_branch
      %40 = sbr.rel (0) target = $region33
    $region32: #{tpu_custom_call.1} parent=1 // pred_region
      _
    $region33: #{tpu_custom_call.1} parent=1 // pred_fallthru
      _
    // Predicated region
    $region34: #{tpu_custom_call.1} parent=1 // pred_check
      _
    $region35: #{tpu_custom_call.1} parent=1 // pred_check_branch
      %42 = sbr.rel (0) target = $region37
    $region36: #{tpu_custom_call.1} parent=1 // pred_region
      _
    $region37: #{tpu_custom_call.1} parent=1 // pred_fallthru
      _
    // Predicated region
    $region38: #{tpu_custom_call.1} parent=1 // pred_check
      _
    $region39: #{tpu_custom_call.1} parent=1 // pred_check_branch
      %44 = sbr.rel (0) target = $region41
    $region40: #{tpu_custom_call.1} parent=1 // pred_region
      _
    $region41: #{tpu_custom_call.1} parent=1 // pred_fallthru
      _
    // Predicated region
    $region42: #{tpu_custom_call.1} parent=1 // pred_check
      _
    $region43: #{tpu_custom_call.1} parent=1 // pred_check_branch
      %46 = sbr.rel (0) target = $region45
    $region44: #{tpu_custom_call.1} parent=1 // pred_region
      %47 = dma.done [#allocation3], 32
    $region45: #{tpu_custom_call.1} parent=1 // pred_fallthru
      _
    %v49 = vld [vmem:[#allocation2] sm:$0x3]
    %v50 = vld [vmem:[%s2] sm:$0xf]
    %v51 = vld [vmem:[%s2 + $0x4] sm:$0xf]
    %v52 = vld [vmem:[%s2 + $0x8] sm:$0xf]
    %v53 = vld [vmem:[%s2 + $0xc] sm:$0xf]
    %v54 = vld [vmem:[%s3] sm:$0x1]
    %v55 = vld [vmem:[%s4] sm:$0xf]
    %v56 = vld [vmem:[%s4 + $0x4] sm:$0xf]
    %v57 = vld [vmem:[%s4 + $0x8] sm:$0xf]
    %v58 = vld [vmem:[%s4 + $0xc] sm:$0xf]
    %v59 = vld [vmem:[%s6] sm:$0xf]
    %v60 = vld [vmem:[%s6 + $0x4] sm:$0xf]
    %v61 = vld [vmem:[%s6 + $0x8] sm:$0xf]
    %v62 = vld [vmem:[%s6 + $0xc] sm:$0xf]
    %v63 = vld [vmem:[%s8] sm:$0xf]
    %v64 = vld [vmem:[%s8 + $0x4] sm:$0xf]
    %v65 = vld [vmem:[%s8 + $0x8] sm:$0xf]
    %v66 = vld [vmem:[%s8 + $0xc] sm:$0xf]
    %v67 = vld [vmem:[%s5] sm:$0x1]
    %v69 = vlaneseq
    %v70 = vshrl.u32 %v69, 7
    %v71 = vsub.s32 0, %v70
    %v72 = vrot.slane %v67, %v71
    %v74 = vld [vmem:[%s7] sm:$0x1]
    %v76 = vlaneseq
    %v77 = vshrl.u32 %v76, 7
    %v78 = vsub.s32 0, %v77
    %v79 = vrot.slane %v74, %v78
    %v81 = vld [vmem:[%s9] sm:$0x1]
    %v83 = vlaneseq
    %v84 = vshrl.u32 %v83, 7
    %v85 = vsub.s32 0, %v84
    %v86 = vrot.slane %v81, %v85
    %v88 = vlaneseq
    %v89 = vand.u32 %v88, 127
    %vm90 = vcmp.ge.s32.totalorder %v89, 64
    %vm91 = vcmp.lt.s32.totalorder %v89, 96
    %vm92 = vmand %vm90, %vm91
    %v93 = vld [vmem:[%s0] sm:$0xff]
    %v94 = vld [vmem:[%s0 + $0x8] sm:$0xff]
    %v95 = vpack.c.bf16 %v94, %v93
    %v97 = vlaneseq
    %v98 = vshrl.u32 %v97, 7
    %v99 = vsub.s32 0, %v98
    %v100 = vrot.slane %v54, %v99
    %vm102 = vcmask 31744
    %v104 = vsel %vm102, %v95, 0
    %vm106 = vcmask 1041408
    %v108 = vsel %vm106, %v49, 0
    %110 = vmatprep.subr.bf16.mxu0 0
    %111 = vmatpush1.bf16.msra.mxu0 %v108
    %112 = vmatprep.subr.bf16.mxu0 0
    %113 = vmatpush1.bf16.msra.mxu0 0
    %114 = vmatprep.subr.bf16.mxu0 0
    %115 = vmatpush1.bf16.msra.mxu0 0
    %116 = vmatprep.subr.bf16.mxu0 0
    %117 = vmatpush1.bf16.msra.mxu0 0
    %118 = vmatprep.subr.bf16.mxu0 0
    %119 = vmatpush1.bf16.msra.mxu0 0
    %120 = vmatprep.subr.bf16.mxu0 0
    %121 = vmatpush1.bf16.msra.mxu0 0
    %122 = vmatprep.subr.bf16.mxu0 0
    %123 = vmatpush1.bf16.msra.mxu0 0
    %124 = vmatprep.subr.bf16.mxu0 0
    %125 = vmatpush1.bf16.msra.mxu0 0
    %126 = vmatprep.subr.bf16.mxu0 0
    %127 = vmatpush1.bf16.msra.mxu0 0
    %128 = vmatprep.subr.bf16.mxu0 0
    %129 = vmatpush1.bf16.msra.mxu0 0
    %130 = vmatprep.subr.bf16.mxu0 0
    %131 = vmatpush1.bf16.msra.mxu0 0
    %132 = vmatprep.subr.bf16.mxu0 0
    %133 = vmatpush1.bf16.msra.mxu0 0
    %134 = vmatprep.subr.bf16.mxu0 0
    %135 = vmatpush1.bf16.msra.mxu0 0
    %136 = vmatprep.subr.bf16.mxu0 0
    %137 = vmatpush1.bf16.msra.mxu0 0
    %138 = vmatprep.subr.bf16.mxu0 0
    %139 = vmatpush1.bf16.msra.mxu0 0
    %140 = vmatprep.subr.bf16.mxu0 0
    %141 = vmatpush1.bf16.msra.mxu0 0
    %142 = vmatprep.mubr.bf16.mxu0 0
    %143 = vmatmul.mubr.bf16.gmra.mrb[0].mxu0 %v104
    %v144 = vpop.f32.mrb[0].mxu0
    %v145 = vadd.f32 %v100, %v144
    %v146 = vpop.f32.mrb[0].mxu0
    %v147 = vpop.f32.mrb[0].mxu0
    %v148 = vadd.f32 %v100, %v147
    %v149 = vpop.f32.mrb[0].mxu0
    %150 = vdwg.mxu0
    %v155 = vunpack.c.l.b16 %v50
    %v156 = vunpack.c.l.b16 %v51
    %v157 = vunpack.c.l.b16 %v52
    %v158 = vunpack.c.l.b16 %v53
    %v159 = vpack.c.b16 %v156, %v155
    %v160 = vpack.c.b16 %v158, %v157
    %vm163 = vcmask 261120
    %v165 = vsel %vm163, 0, 0
    %167 = vmatprep.subr.bf16.mxu0 0
    %168 = vmatpush1.bf16.msra.mxu0 %v159
    %169 = vmatprep.subr.bf16.mxu0 0
    %170 = vmatpush1.bf16.msra.mxu0 %v160
    %171 = vmatprep.subr.bf16.mxu0 0
    %172 = vmatpush1.bf16.msra.mxu0 0
    %173 = vmatprep.subr.bf16.mxu0 0
    %174 = vmatpush1.bf16.msra.mxu0 0
    %175 = vmatprep.subr.bf16.mxu0 0
    %176 = vmatpush1.bf16.msra.mxu0 0
    %177 = vmatprep.subr.bf16.mxu0 0
    %178 = vmatpush1.bf16.msra.mxu0 0
    %179 = vmatprep.subr.bf16.mxu0 0
    %180 = vmatpush1.bf16.msra.mxu0 0
    %181 = vmatprep.subr.bf16.mxu0 0
    %182 = vmatpush1.bf16.msra.mxu0 0
    %183 = vmatprep.subr.bf16.mxu0 0
    %184 = vmatpush1.bf16.msra.mxu0 0
    %185 = vmatprep.subr.bf16.mxu0 0
    %186 = vmatpush1.bf16.msra.mxu0 0
    %187 = vmatprep.subr.bf16.mxu0 0
    %188 = vmatpush1.bf16.msra.mxu0 0
    %189 = vmatprep.subr.bf16.mxu0 0
    %190 = vmatpush1.bf16.msra.mxu0 0
    %191 = vmatprep.subr.bf16.mxu0 0
    %192 = vmatpush1.bf16.msra.mxu0 0
    %193 = vmatprep.subr.bf16.mxu0 0
    %194 = vmatpush1.bf16.msra.mxu0 0
    %195 = vmatprep.subr.bf16.mxu0 0
    %196 = vmatpush1.bf16.msra.mxu0 0
    %197 = vmatprep.subr.bf16.mxu0 0
    %198 = vmatpush1.bf16.msra.mxu0 0
    %199 = vmatprep.mubr.bf16.mxu0 0
    %200 = vmatmul.mubr.bf16.gmra.mrb[0].mxu0 %v165
    %v201 = vpop.f32.mrb[0].mxu0
    %v202 = vadd.f32 0.0, %v201
    %v203 = vpop.f32.mrb[0].mxu0
    %v204 = vpop.f32.mrb[0].mxu0
    %v205 = vpop.f32.mrb[0].mxu0
    %206 = vdwg.mxu0
    %v207 = vadd.f32 %v145, %v202
    %v208 = vtanh.pop %v207
    %v209 = vxor.u32 %v207, 2147483648
    %v210 = vmul.f32 %v209, 1.442695
    %v211 = vpow.pop %v210
    %v212 = vadd.f32 %v211, 1.0
    %v213 = vrcp.pop %v212
    %v214 = vmul.f32 1.0, %v213
    %v215 = vsel %vm92, %v208, %v214
    %v216 = vmul.f32 %v215, 0.0
    %218 = vrot.lane.b32.xlu0 %v215, 64
    %v219 = vpop.permute.xlu0 %218
    %v221 = vmul.f32 %v215, %v219
    %223 = vrot.lane.b32.xlu0 %v221, 32
    %v224 = vpop.permute.xlu0 %223
    %v226 = vadd.f32 %v216, %v224
    %v227 = vtanh.pop %v226
    %229 = vrot.lane.b32.xlu0 %v227, 64
    %v230 = vpop.permute.xlu0 %229
    %v232 = vmul.f32 %v215, %v230
    %v233 = vpack.c.bf16 %v232, %v232
    %235 = vrot.lane.b32.xlu0 %v233, 32
    %v236 = vpop.permute.xlu0 %235
    %v238 = vsel %vm163, %v236, 0
    %240 = vmatprep.subr.bf16.mxu0 0
    %241 = vmatpush1.bf16.msra.mxu0 %v159
    %242 = vmatprep.subr.bf16.mxu0 0
    %243 = vmatpush1.bf16.msra.mxu0 %v160
    %244 = vmatprep.subr.bf16.mxu0 0
    %245 = vmatpush1.bf16.msra.mxu0 0
    %246 = vmatprep.subr.bf16.mxu0 0
    %247 = vmatpush1.bf16.msra.mxu0 0
    %248 = vmatprep.subr.bf16.mxu0 0
    %249 = vmatpush1.bf16.msra.mxu0 0
    %250 = vmatprep.subr.bf16.mxu0 0
    %251 = vmatpush1.bf16.msra.mxu0 0
    %252 = vmatprep.subr.bf16.mxu0 0
    %253 = vmatpush1.bf16.msra.mxu0 0
    %254 = vmatprep.subr.bf16.mxu0 0
    %255 = vmatpush1.bf16.msra.mxu0 0
    %256 = vmatprep.subr.bf16.mxu0 0
    %257 = vmatpush1.bf16.msra.mxu0 0
    %258 = vmatprep.subr.bf16.mxu0 0
    %259 = vmatpush1.bf16.msra.mxu0 0
    %260 = vmatprep.subr.bf16.mxu0 0
    %261 = vmatpush1.bf16.msra.mxu0 0
    %262 = vmatprep.subr.bf16.mxu0 0
    %263 = vmatpush1.bf16.msra.mxu0 0
    %264 = vmatprep.subr.bf16.mxu0 0
    %265 = vmatpush1.bf16.msra.mxu0 0
    %266 = vmatprep.subr.bf16.mxu0 0
    %267 = vmatpush1.bf16.msra.mxu0 0
    %268 = vmatprep.subr.bf16.mxu0 0
    %269 = vmatpush1.bf16.msra.mxu0 0
    %270 = vmatprep.subr.bf16.mxu0 0
    %271 = vmatpush1.bf16.msra.mxu0 0
    %272 = vmatprep.mubr.bf16.mxu0 0
    %273 = vmatmul.mubr.bf16.gmra.mrb[0].mxu0 %v238
    %v274 = vpop.f32.mrb[0].mxu0
    %v275 = vadd.f32 0.0, %v274
    %v276 = vpop.f32.mrb[0].mxu0
    %v277 = vpop.f32.mrb[0].mxu0
    %v278 = vpop.f32.mrb[0].mxu0
    %279 = vdwg.mxu0
    %v281 = vrot.slane %v275, 6
    %v283 = vadd.f32 %v145, %v281
    %v284 = vtanh.pop %v283
    %v285 = vxor.u32 %v283, 2147483648
    %v286 = vmul.f32 %v285, 1.442695
    %v287 = vpow.pop %v286
    %v288 = vadd.f32 %v287, 1.0
    %v289 = vrcp.pop %v288
    %v290 = vmul.f32 1.0, %v289
    %v291 = vsel %vm92, %v284, %v290
    %v293 = vrot.slane %v226, 6
    %v295 = vmul.f32 %v291, %v293
    %297 = vrot.lane.b32.xlu0 %v291, 64
    %v298 = vpop.permute.xlu0 %297
    %v300 = vmul.f32 %v291, %v298
    %302 = vrot.lane.b32.xlu0 %v300, 32
    %v303 = vpop.permute.xlu0 %302
    %v305 = vadd.f32 %v295, %v303
    %v306 = vtanh.pop %v305
    %308 = vrot.lane.b32.xlu0 %v306, 64
    %v309 = vpop.permute.xlu0 %308
    %v311 = vmul.f32 %v291, %v309
    %v312 = vpack.c.bf16 %v311, %v311
    %v314 = vrot.slane %v312, 1
    %315 = vrot.lane.b32.xlu0 %v314, 32
    %v316 = vpop.permute.xlu0 %315
    %v318 = vsel %vm163, %v316, 0
    %320 = vmatprep.subr.bf16.mxu0 0
    %321 = vmatpush1.bf16.msra.mxu0 %v159
    %322 = vmatprep.subr.bf16.mxu0 0
    %323 = vmatpush1.bf16.msra.mxu0 %v160
    %324 = vmatprep.subr.bf16.mxu0 0
    %325 = vmatpush1.bf16.msra.mxu0 0
    %326 = vmatprep.subr.bf16.mxu0 0
    %327 = vmatpush1.bf16.msra.mxu0 0
    %328 = vmatprep.subr.bf16.mxu0 0
    %329 = vmatpush1.bf16.msra.mxu0 0
    %330 = vmatprep.subr.bf16.mxu0 0
    %331 = vmatpush1.bf16.msra.mxu0 0
    %332 = vmatprep.subr.bf16.mxu0 0
    %333 = vmatpush1.bf16.msra.mxu0 0
    %334 = vmatprep.subr.bf16.mxu0 0
    %335 = vmatpush1.bf16.msra.mxu0 0
    %336 = vmatprep.subr.bf16.mxu0 0
    %337 = vmatpush1.bf16.msra.mxu0 0
    %338 = vmatprep.subr.bf16.mxu0 0
    %339 = vmatpush1.bf16.msra.mxu0 0
    %340 = vmatprep.subr.bf16.mxu0 0
    %341 = vmatpush1.bf16.msra.mxu0 0
    %342 = vmatprep.subr.bf16.mxu0 0
    %343 = vmatpush1.bf16.msra.mxu0 0
    %344 = vmatprep.subr.bf16.mxu0 0
    %345 = vmatpush1.bf16.msra.mxu0 0
    %346 = vmatprep.subr.bf16.mxu0 0
    %347 = vmatpush1.bf16.msra.mxu0 0
    %348 = vmatprep.subr.bf16.mxu0 0
    %349 = vmatpush1.bf16.msra.mxu0 0
    %350 = vmatprep.subr.bf16.mxu0 0
    %351 = vmatpush1.bf16.msra.mxu0 0
    %352 = vmatprep.mubr.bf16.mxu0 0
    %353 = vmatmul.mubr.bf16.gmra.mrb[0].mxu0 %v318
    %v354 = vpop.f32.mrb[0].mxu0
    %v355 = vadd.f32 0.0, %v354
    %v356 = vpop.f32.mrb[0].mxu0
    %v357 = vpop.f32.mrb[0].mxu0
    %v358 = vpop.f32.mrb[0].mxu0
    %359 = vdwg.mxu0
    %v361 = vrot.slane %v355, 4
    %v363 = vadd.f32 %v145, %v361
    %v364 = vtanh.pop %v363
    %v365 = vxor.u32 %v363, 2147483648
    %v366 = vmul.f32 %v365, 1.442695
    %v367 = vpow.pop %v366
    %v368 = vadd.f32 %v367, 1.0
    %v369 = vrcp.pop %v368
    %v370 = vmul.f32 1.0, %v369
    %v371 = vsel %vm92, %v364, %v370
    %v373 = vrot.slane %v305, 6
    %v375 = vmul.f32 %v371, %v373
    %377 = vrot.lane.b32.xlu0 %v371, 64
    %v378 = vpop.permute.xlu0 %377
    %v380 = vmul.f32 %v371, %v378
    %382 = vrot.lane.b32.xlu0 %v380, 32
    %v383 = vpop.permute.xlu0 %382
    %v385 = vadd.f32 %v375, %v383
    %v386 = vtanh.pop %v385
    %388 = vrot.lane.b32.xlu0 %v386, 64
    %v389 = vpop.permute.xlu0 %388
    %v391 = vmul.f32 %v371, %v389
    %v392 = vpack.c.bf16 %v391, %v391
    %v394 = vrot.slane %v392, 2
    %395 = vrot.lane.b32.xlu0 %v394, 32
    %v396 = vpop.permute.xlu0 %395
    %v398 = vsel %vm163, %v396, 0
    %400 = vmatprep.subr.bf16.mxu0 0
    %401 = vmatpush1.bf16.msra.mxu0 %v159
    %402 = vmatprep.subr.bf16.mxu0 0
    %403 = vmatpush1.bf16.msra.mxu0 %v160
    %404 = vmatprep.subr.bf16.mxu0 0
    %405 = vmatpush1.bf16.msra.mxu0 0
    %406 = vmatprep.subr.bf16.mxu0 0
    %407 = vmatpush1.bf16.msra.mxu0 0
    %408 = vmatprep.subr.bf16.mxu0 0
    %409 = vmatpush1.bf16.msra.mxu0 0
    %410 = vmatprep.subr.bf16.mxu0 0
    %411 = vmatpush1.bf16.msra.mxu0 0
    %412 = vmatprep.subr.bf16.mxu0 0
    %413 = vmatpush1.bf16.msra.mxu0 0
    %414 = vmatprep.subr.bf16.mxu0 0
    %415 = vmatpush1.bf16.msra.mxu0 0
    %416 = vmatprep.subr.bf16.mxu0 0
    %417 = vmatpush1.bf16.msra.mxu0 0
    %418 = vmatprep.subr.bf16.mxu0 0
    %419 = vmatpush1.bf16.msra.mxu0 0
    %420 = vmatprep.subr.bf16.mxu0 0
    %421 = vmatpush1.bf16.msra.mxu0 0
    %422 = vmatprep.subr.bf16.mxu0 0
    %423 = vmatpush1.bf16.msra.mxu0 0
    %424 = vmatprep.subr.bf16.mxu0 0
    %425 = vmatpush1.bf16.msra.mxu0 0
    %426 = vmatprep.subr.bf16.mxu0 0
    %427 = vmatpush1.bf16.msra.mxu0 0
    %428 = vmatprep.subr.bf16.mxu0 0
    %429 = vmatpush1.bf16.msra.mxu0 0
    %430 = vmatprep.subr.bf16.mxu0 0
    %431 = vmatpush1.bf16.msra.mxu0 0
    %432 = vmatprep.mubr.bf16.mxu0 0
    %433 = vmatmul.mubr.bf16.gmra.mrb[0].mxu0 %v398
    %v434 = vpop.f32.mrb[0].mxu0
    %v435 = vadd.f32 0.0, %v434
    %v436 = vpop.f32.mrb[0].mxu0
    %v437 = vpop.f32.mrb[0].mxu0
    %v438 = vpop.f32.mrb[0].mxu0
    %439 = vdwg.mxu0
    %v441 = vrot.slane %v435, 2
    %v443 = vadd.f32 %v145, %v441
    %v444 = vtanh.pop %v443
    %v445 = vxor.u32 %v443, 2147483648
    %v446 = vmul.f32 %v445, 1.442695
    %v447 = vpow.pop %v446
    %v448 = vadd.f32 %v447, 1.0
    %v449 = vrcp.pop %v448
    %v450 = vmul.f32 1.0, %v449
    %v451 = vsel %vm92, %v444, %v450
    %v453 = vrot.slane %v385, 6
    %v455 = vmul.f32 %v451, %v453
    %457 = vrot.lane.b32.xlu0 %v451, 64
    %v458 = vpop.permute.xlu0 %457
    %v460 = vmul.f32 %v451, %v458
    %462 = vrot.lane.b32.xlu0 %v460, 32
    %v463 = vpop.permute.xlu0 %462
    %v465 = vadd.f32 %v455, %v463
    %v466 = vtanh.pop %v465
    %468 = vrot.lane.b32.xlu0 %v466, 64
    %v469 = vpop.permute.xlu0 %468
    %v471 = vmul.f32 %v451, %v469
    %v472 = vpack.c.bf16 %v471, %v471
    %v474 = vrot.slane %v472, 3
    %475 = vrot.lane.b32.xlu0 %v474, 32
    %v476 = vpop.permute.xlu0 %475
    %v478 = vsel %vm163, %v476, 0
    %480 = vmatprep.subr.bf16.mxu0 0
    %481 = vmatpush1.bf16.msra.mxu0 %v159
    %482 = vmatprep.subr.bf16.mxu0 0
    %483 = vmatpush1.bf16.msra.mxu0 %v160
    %484 = vmatprep.subr.bf16.mxu0 0
    %485 = vmatpush1.bf16.msra.mxu0 0
    %486 = vmatprep.subr.bf16.mxu0 0
    %487 = vmatpush1.bf16.msra.mxu0 0
    %488 = vmatprep.subr.bf16.mxu0 0
    %489 = vmatpush1.bf16.msra.mxu0 0
    %490 = vmatprep.subr.bf16.mxu0 0
    %491 = vmatpush1.bf16.msra.mxu0 0
    %492 = vmatprep.subr.bf16.mxu0 0
    %493 = vmatpush1.bf16.msra.mxu0 0
    %494 = vmatprep.subr.bf16.mxu0 0
    %495 = vmatpush1.bf16.msra.mxu0 0
    %496 = vmatprep.subr.bf16.mxu0 0
    %497 = vmatpush1.bf16.msra.mxu0 0
    %498 = vmatprep.subr.bf16.mxu0 0
    %499 = vmatpush1.bf16.msra.mxu0 0
    %500 = vmatprep.subr.bf16.mxu0 0
    %501 = vmatpush1.bf16.msra.mxu0 0
    %502 = vmatprep.subr.bf16.mxu0 0
    %503 = vmatpush1.bf16.msra.mxu0 0
    %504 = vmatprep.subr.bf16.mxu0 0
    %505 = vmatpush1.bf16.msra.mxu0 0
    %506 = vmatprep.subr.bf16.mxu0 0
    %507 = vmatpush1.bf16.msra.mxu0 0
    %508 = vmatprep.subr.bf16.mxu0 0
    %509 = vmatpush1.bf16.msra.mxu0 0
    %510 = vmatprep.subr.bf16.mxu0 0
    %511 = vmatpush1.bf16.msra.mxu0 0
    %512 = vmatprep.mubr.bf16.mxu0 0
    %513 = vmatmul.mubr.bf16.gmra.mrb[0].mxu0 %v478
    %v514 = vpop.f32.mrb[0].mxu0
    %v515 = vadd.f32 0.0, %v514
    %v516 = vpop.f32.mrb[0].mxu0
    %v517 = vpop.f32.mrb[0].mxu0
    %v518 = vpop.f32.mrb[0].mxu0
    %519 = vdwg.mxu0
    %v520 = vadd.f32 %v148, %v515
    %v521 = vtanh.pop %v520
    %v522 = vxor.u32 %v520, 2147483648
    %v523 = vmul.f32 %v522, 1.442695
    %v524 = vpow.pop %v523
    %v525 = vadd.f32 %v524, 1.0
    %v526 = vrcp.pop %v525
    %v527 = vmul.f32 1.0, %v526
    %v528 = vsel %vm92, %v521, %v527
    %v530 = vrot.slane %v465, 6
    %v532 = vmul.f32 %v528, %v530
    %534 = vrot.lane.b32.xlu0 %v528, 64
    %v535 = vpop.permute.xlu0 %534
    %v537 = vmul.f32 %v528, %v535
    %539 = vrot.lane.b32.xlu0 %v537, 32
    %v540 = vpop.permute.xlu0 %539
    %v542 = vadd.f32 %v532, %v540
    %v543 = vtanh.pop %v542
    %545 = vrot.lane.b32.xlu0 %v543, 64
    %v546 = vpop.permute.xlu0 %545
    %v548 = vmul.f32 %v528, %v546
    %v549 = vpack.c.bf16 %v548, %v548
    %551 = vrot.lane.b32.xlu0 %v549, 32
    %v552 = vpop.permute.xlu0 %551
    %v554 = vsel %vm163, %v552, 0
    %556 = vmatprep.subr.bf16.mxu0 0
    %557 = vmatpush1.bf16.msra.mxu0 %v159
    %558 = vmatprep.subr.bf16.mxu0 0
    %559 = vmatpush1.bf16.msra.mxu0 %v160
    %560 = vmatprep.subr.bf16.mxu0 0
    %561 = vmatpush1.bf16.msra.mxu0 0
    %562 = vmatprep.subr.bf16.mxu0 0
    %563 = vmatpush1.bf16.msra.mxu0 0
    %564 = vmatprep.subr.bf16.mxu0 0
    %565 = vmatpush1.bf16.msra.mxu0 0
    %566 = vmatprep.subr.bf16.mxu0 0
    %567 = vmatpush1.bf16.msra.mxu0 0
    %568 = vmatprep.subr.bf16.mxu0 0
    %569 = vmatpush1.bf16.msra.mxu0 0
    %570 = vmatprep.subr.bf16.mxu0 0
    %571 = vmatpush1.bf16.msra.mxu0 0
    %572 = vmatprep.subr.bf16.mxu0 0
    %573 = vmatpush1.bf16.msra.mxu0 0
    %574 = vmatprep.subr.bf16.mxu0 0
    %575 = vmatpush1.bf16.msra.mxu0 0
    %576 = vmatprep.subr.bf16.mxu0 0
    %577 = vmatpush1.bf16.msra.mxu0 0
    %578 = vmatprep.subr.bf16.mxu0 0
    %579 = vmatpush1.bf16.msra.mxu0 0
    %580 = vmatprep.subr.bf16.mxu0 0
    %581 = vmatpush1.bf16.msra.mxu0 0
    %582 = vmatprep.subr.bf16.mxu0 0
    %583 = vmatpush1.bf16.msra.mxu0 0
    %584 = vmatprep.subr.bf16.mxu0 0
    %585 = vmatpush1.bf16.msra.mxu0 0
    %586 = vmatprep.subr.bf16.mxu0 0
    %587 = vmatpush1.bf16.msra.mxu0 0
    %588 = vmatprep.mubr.bf16.mxu0 0
    %589 = vmatmul.mubr.bf16.gmra.mrb[0].mxu0 %v554
    %v590 = vpop.f32.mrb[0].mxu0
    %v591 = vadd.f32 0.0, %v590
    %v592 = vpop.f32.mrb[0].mxu0
    %v593 = vpop.f32.mrb[0].mxu0
    %v594 = vpop.f32.mrb[0].mxu0
    %595 = vdwg.mxu0
    %v597 = vrot.slane %v591, 6
    %v599 = vadd.f32 %v148, %v597
    %v600 = vtanh.pop %v599
    %v601 = vxor.u32 %v599, 2147483648
    %v602 = vmul.f32 %v601, 1.442695
    %v603 = vpow.pop %v602
    %v604 = vadd.f32 %v603, 1.0
    %v605 = vrcp.pop %v604
    %v606 = vmul.f32 1.0, %v605
    %v607 = vsel %vm92, %v600, %v606
    %v609 = vrot.slane %v542, 6
    %v611 = vmul.f32 %v607, %v609
    %613 = vrot.lane.b32.xlu0 %v607, 64
    %v614 = vpop.permute.xlu0 %613
    %v616 = vmul.f32 %v607, %v614
    %618 = vrot.lane.b32.xlu0 %v616, 32
    %v619 = vpop.permute.xlu0 %618
    %v621 = vadd.f32 %v611, %v619
    %v622 = vtanh.pop %v621
    %624 = vrot.lane.b32.xlu0 %v622, 64
    %v625 = vpop.permute.xlu0 %624
    %v627 = vmul.f32 %v607, %v625
    %v628 = vpack.c.bf16 %v627, %v627
    %v630 = vrot.slane %v628, 1
    %631 = vrot.lane.b32.xlu0 %v630, 32
    %v632 = vpop.permute.xlu0 %631
    %v634 = vsel %vm163, %v632, 0
    %636 = vmatprep.subr.bf16.mxu0 0
    %637 = vmatpush1.bf16.msra.mxu0 %v159
    %638 = vmatprep.subr.bf16.mxu0 0
    %639 = vmatpush1.bf16.msra.mxu0 %v160
    %640 = vmatprep.subr.bf16.mxu0 0
    %641 = vmatpush1.bf16.msra.mxu0 0
    %642 = vmatprep.subr.bf16.mxu0 0
    %643 = vmatpush1.bf16.msra.mxu0 0
    %644 = vmatprep.subr.bf16.mxu0 0
    %645 = vmatpush1.bf16.msra.mxu0 0
    %646 = vmatprep.subr.bf16.mxu0 0
    %647 = vmatpush1.bf16.msra.mxu0 0
    %648 = vmatprep.subr.bf16.mxu0 0
    %649 = vmatpush1.bf16.msra.mxu0 0
    %650 = vmatprep.subr.bf16.mxu0 0
    %651 = vmatpush1.bf16.msra.mxu0 0
    %652 = vmatprep.subr.bf16.mxu0 0
    %653 = vmatpush1.bf16.msra.mxu0 0
    %654 = vmatprep.subr.bf16.mxu0 0
    %655 = vmatpush1.bf16.msra.mxu0 0
    %656 = vmatprep.subr.bf16.mxu0 0
    %657 = vmatpush1.bf16.msra.mxu0 0
    %658 = vmatprep.subr.bf16.mxu0 0
    %659 = vmatpush1.bf16.msra.mxu0 0
    %660 = vmatprep.subr.bf16.mxu0 0
    %661 = vmatpush1.bf16.msra.mxu0 0
    %662 = vmatprep.subr.bf16.mxu0 0
    %663 = vmatpush1.bf16.msra.mxu0 0
    %664 = vmatprep.subr.bf16.mxu0 0
    %665 = vmatpush1.bf16.msra.mxu0 0
    %666 = vmatprep.subr.bf16.mxu0 0
    %667 = vmatpush1.bf16.msra.mxu0 0
    %668 = vmatprep.mubr.bf16.mxu0 0
    %669 = vmatmul.mubr.bf16.gmra.mrb[0].mxu0 %v634
    %v670 = vpop.f32.mrb[0].mxu0
    %v671 = vadd.f32 0.0, %v670
    %v672 = vpop.f32.mrb[0].mxu0
    %v673 = vpop.f32.mrb[0].mxu0
    %v674 = vpop.f32.mrb[0].mxu0
    %675 = vdwg.mxu0
    %v677 = vrot.slane %v671, 4
    %v679 = vadd.f32 %v148, %v677
    %v680 = vtanh.pop %v679
    %v681 = vxor.u32 %v679, 2147483648
    %v682 = vmul.f32 %v681, 1.442695
    %v683 = vpow.pop %v682
    %v684 = vadd.f32 %v683, 1.0
    %v685 = vrcp.pop %v684
    %v686 = vmul.f32 1.0, %v685
    %v687 = vsel %vm92, %v680, %v686
    %v689 = vrot.slane %v621, 6
    %v691 = vmul.f32 %v687, %v689
    %693 = vrot.lane.b32.xlu0 %v687, 64
    %v694 = vpop.permute.xlu0 %693
    %v696 = vmul.f32 %v687, %v694
    %698 = vrot.lane.b32.xlu0 %v696, 32
    %v699 = vpop.permute.xlu0 %698
    %v701 = vadd.f32 %v691, %v699
    %v702 = vtanh.pop %v701
    %704 = vrot.lane.b32.xlu0 %v702, 64
    %v705 = vpop.permute.xlu0 %704
    %v707 = vmul.f32 %v687, %v705
    %v708 = vpack.c.bf16 %v707, %v707
    %v710 = vrot.slane %v708, 2
    %711 = vrot.lane.b32.xlu0 %v710, 32
    %v712 = vpop.permute.xlu0 %711
    %v714 = vsel %vm163, %v712, 0
    %716 = vmatprep.subr.bf16.mxu0 0
    %717 = vmatpush1.bf16.msra.mxu0 %v159
    %718 = vmatprep.subr.bf16.mxu0 0
    %719 = vmatpush1.bf16.msra.mxu0 %v160
    %720 = vmatprep.subr.bf16.mxu0 0
    %721 = vmatpush1.bf16.msra.mxu0 0
    %722 = vmatprep.subr.bf16.mxu0 0
    %723 = vmatpush1.bf16.msra.mxu0 0
    %724 = vmatprep.subr.bf16.mxu0 0
    %725 = vmatpush1.bf16.msra.mxu0 0
    %726 = vmatprep.subr.bf16.mxu0 0
    %727 = vmatpush1.bf16.msra.mxu0 0
    %728 = vmatprep.subr.bf16.mxu0 0
    %729 = vmatpush1.bf16.msra.mxu0 0
    %730 = vmatprep.subr.bf16.mxu0 0
    %731 = vmatpush1.bf16.msra.mxu0 0
    %732 = vmatprep.subr.bf16.mxu0 0
    %733 = vmatpush1.bf16.msra.mxu0 0
    %734 = vmatprep.subr.bf16.mxu0 0
    %735 = vmatpush1.bf16.msra.mxu0 0
    %736 = vmatprep.subr.bf16.mxu0 0
    %737 = vmatpush1.bf16.msra.mxu0 0
    %738 = vmatprep.subr.bf16.mxu0 0
    %739 = vmatpush1.bf16.msra.mxu0 0
    %740 = vmatprep.subr.bf16.mxu0 0
    %741 = vmatpush1.bf16.msra.mxu0 0
    %742 = vmatprep.subr.bf16.mxu0 0
    %743 = vmatpush1.bf16.msra.mxu0 0
    %744 = vmatprep.subr.bf16.mxu0 0
    %745 = vmatpush1.bf16.msra.mxu0 0
    %746 = vmatprep.subr.bf16.mxu0 0
    %747 = vmatpush1.bf16.msra.mxu0 0
    %748 = vmatprep.mubr.bf16.mxu0 0
    %749 = vmatmul.mubr.bf16.gmra.mrb[0].mxu0 %v714
    %v750 = vpop.f32.mrb[0].mxu0
    %v751 = vadd.f32 0.0, %v750
    %v752 = vpop.f32.mrb[0].mxu0
    %v753 = vpop.f32.mrb[0].mxu0
    %v754 = vpop.f32.mrb[0].mxu0
    %755 = vdwg.mxu0
    %v757 = vrot.slane %v751, 2
    %v759 = vadd.f32 %v148, %v757
    %v760 = vtanh.pop %v759
    %v761 = vxor.u32 %v759, 2147483648
    %v762 = vmul.f32 %v761, 1.442695
    %v763 = vpow.pop %v762
    %v764 = vadd.f32 %v763, 1.0
    %v765 = vrcp.pop %v764
    %v766 = vmul.f32 1.0, %v765
    %v767 = vsel %vm92, %v760, %v766
    %v769 = vrot.slane %v701, 6
    %v771 = vmul.f32 %v767, %v769
    %773 = vrot.lane.b32.xlu0 %v767, 64
    %v774 = vpop.permute.xlu0 %773
    %v776 = vmul.f32 %v767, %v774
    %778 = vrot.lane.b32.xlu0 %v776, 32
    %v779 = vpop.permute.xlu0 %778
    %v781 = vadd.f32 %v771, %v779
    %v782 = vtanh.pop %v781
    %784 = vrot.lane.b32.xlu0 %v782, 64
    %v785 = vpop.permute.xlu0 %784
    %v787 = vmul.f32 %v767, %v785
    %v788 = vpack.c.bf16 %v787, %v787
    %v790 = vrot.slane %v788, 3
    %791 = vrot.lane.b32.xlu0 %v790, 32
    %v792 = vpop.permute.xlu0 %791
    %v797 = vunpack.c.l.b16 %v55
    %v798 = vunpack.c.l.b16 %v56
    %v799 = vunpack.c.l.b16 %v57
    %v800 = vunpack.c.l.b16 %v58
    %v801 = vpack.c.b16 %v798, %v797
    %v802 = vpack.c.b16 %v800, %v799
    %v806 = vsel %vm163, %v792, 0
    %808 = vmatprep.subr.bf16.mxu0 0
    %809 = vmatpush1.bf16.msra.mxu0 %v801
    %810 = vmatprep.subr.bf16.mxu0 0
    %811 = vmatpush1.bf16.msra.mxu0 %v802
    %812 = vmatprep.subr.bf16.mxu0 0
    %813 = vmatpush1.bf16.msra.mxu0 0
    %814 = vmatprep.subr.bf16.mxu0 0
    %815 = vmatpush1.bf16.msra.mxu0 0
    %816 = vmatprep.subr.bf16.mxu0 0
    %817 = vmatpush1.bf16.msra.mxu0 0
    %818 = vmatprep.subr.bf16.mxu0 0
    %819 = vmatpush1.bf16.msra.mxu0 0
    %820 = vmatprep.subr.bf16.mxu0 0
    %821 = vmatpush1.bf16.msra.mxu0 0
    %822 = vmatprep.subr.bf16.mxu0 0
    %823 = vmatpush1.bf16.msra.mxu0 0
    %824 = vmatprep.subr.bf16.mxu0 0
    %825 = vmatpush1.bf16.msra.mxu0 0
    %826 = vmatprep.subr.bf16.mxu0 0
    %827 = vmatpush1.bf16.msra.mxu0 0
    %828 = vmatprep.subr.bf16.mxu0 0
    %829 = vmatpush1.bf16.msra.mxu0 0
    %830 = vmatprep.subr.bf16.mxu0 0
    %831 = vmatpush1.bf16.msra.mxu0 0
    %832 = vmatprep.subr.bf16.mxu0 0
    %833 = vmatpush1.bf16.msra.mxu0 0
    %834 = vmatprep.subr.bf16.mxu0 0
    %835 = vmatpush1.bf16.msra.mxu0 0
    %836 = vmatprep.subr.bf16.mxu0 0
    %837 = vmatpush1.bf16.msra.mxu0 0
    %838 = vmatprep.subr.bf16.mxu0 0
    %839 = vmatpush1.bf16.msra.mxu0 0
    %840 = vmatprep.mubr.bf16.mxu0 0
    %841 = vmatmul.mubr.bf16.gmra.mrb[0].mxu0 %v806
    %v842 = vpop.f32.mrb[0].mxu0
    %v843 = vadd.f32 %v72, %v842
    %v844 = vpop.f32.mrb[0].mxu0
    %v845 = vpop.f32.mrb[0].mxu0
    %v846 = vpop.f32.mrb[0].mxu0
    %847 = vdwg.mxu0
    %v848 = vtanh.pop %v843
    %v849 = vxor.u32 %v843, 2147483648
    %v850 = vmul.f32 %v849, 1.442695
    %v851 = vpow.pop %v850
    %v852 = vadd.f32 %v851, 1.0
    %v853 = vrcp.pop %v852
    %v854 = vmul.f32 1.0, %v853
    %v855 = vsel %vm92, %v848, %v854
    %857 = vrot.lane.b32.xlu0 %v855, 64
    %v858 = vpop.permute.xlu0 %857
    %v860 = vmul.f32 %v855, %v858
    %v861 = vtanh.pop %v860
    %863 = vrot.lane.b32.xlu0 %v861, 96
    %v864 = vpop.permute.xlu0 %863
    %v866 = vmul.f32 %v855, %v864
    %v867 = vpack.c.bf16 %v866, %v866
    %869 = vrot.lane.b32.xlu0 %v867, 32
    %v870 = vpop.permute.xlu0 %869
    %v875 = vunpack.c.l.b16 %v59
    %v876 = vunpack.c.l.b16 %v60
    %v877 = vunpack.c.l.b16 %v61
    %v878 = vunpack.c.l.b16 %v62
    %v879 = vpack.c.b16 %v876, %v875
    %v880 = vpack.c.b16 %v878, %v877
    %v884 = vsel %vm163, %v870, 0
    %886 = vmatprep.subr.bf16.mxu0 0
    %887 = vmatpush1.bf16.msra.mxu0 %v879
    %888 = vmatprep.subr.bf16.mxu0 0
    %889 = vmatpush1.bf16.msra.mxu0 %v880
    %890 = vmatprep.subr.bf16.mxu0 0
    %891 = vmatpush1.bf16.msra.mxu0 0
    %892 = vmatprep.subr.bf16.mxu0 0
    %893 = vmatpush1.bf16.msra.mxu0 0
    %894 = vmatprep.subr.bf16.mxu0 0
    %895 = vmatpush1.bf16.msra.mxu0 0
    %896 = vmatprep.subr.bf16.mxu0 0
    %897 = vmatpush1.bf16.msra.mxu0 0
    %898 = vmatprep.subr.bf16.mxu0 0
    %899 = vmatpush1.bf16.msra.mxu0 0
    %900 = vmatprep.subr.bf16.mxu0 0
    %901 = vmatpush1.bf16.msra.mxu0 0
    %902 = vmatprep.subr.bf16.mxu0 0
    %903 = vmatpush1.bf16.msra.mxu0 0
    %904 = vmatprep.subr.bf16.mxu0 0
    %905 = vmatpush1.bf16.msra.mxu0 0
    %906 = vmatprep.subr.bf16.mxu0 0
    %907 = vmatpush1.bf16.msra.mxu0 0
    %908 = vmatprep.subr.bf16.mxu0 0
    %909 = vmatpush1.bf16.msra.mxu0 0
    %910 = vmatprep.subr.bf16.mxu0 0
    %911 = vmatpush1.bf16.msra.mxu0 0
    %912 = vmatprep.subr.bf16.mxu0 0
    %913 = vmatpush1.bf16.msra.mxu0 0
    %914 = vmatprep.subr.bf16.mxu0 0
    %915 = vmatpush1.bf16.msra.mxu0 0
    %916 = vmatprep.subr.bf16.mxu0 0
    %917 = vmatpush1.bf16.msra.mxu0 0
    %918 = vmatprep.mubr.bf16.mxu0 0
    %919 = vmatmul.mubr.bf16.gmra.mrb[0].mxu0 %v884
    %v920 = vpop.f32.mrb[0].mxu0
    %v921 = vadd.f32 %v79, %v920
    %v922 = vpop.f32.mrb[0].mxu0
    %v923 = vpop.f32.mrb[0].mxu0
    %v924 = vpop.f32.mrb[0].mxu0
    %925 = vdwg.mxu0
    %v926 = vmax.f32 %v921, 0.0
    %v927 = vpack.c.bf16 %v926, %v926
    %v932 = vunpack.c.l.b16 %v63
    %v933 = vunpack.c.l.b16 %v64
    %v934 = vunpack.c.l.b16 %v65
    %v935 = vunpack.c.l.b16 %v66
    %v936 = vpack.c.b16 %v933, %v932
    %v937 = vpack.c.b16 %v935, %v934
    %v941 = vsel %vm163, %v927, 0
    %943 = vmatprep.subr.bf16.mxu0 0
    %944 = vmatpush1.bf16.msra.mxu0 %v936
    %945 = vmatprep.subr.bf16.mxu0 0
    %946 = vmatpush1.bf16.msra.mxu0 %v937
    %947 = vmatprep.subr.bf16.mxu0 0
    %948 = vmatpush1.bf16.msra.mxu0 0
    %949 = vmatprep.subr.bf16.mxu0 0
    %950 = vmatpush1.bf16.msra.mxu0 0
    %951 = vmatprep.subr.bf16.mxu0 0
    %952 = vmatpush1.bf16.msra.mxu0 0
    %953 = vmatprep.subr.bf16.mxu0 0
    %954 = vmatpush1.bf16.msra.mxu0 0
    %955 = vmatprep.subr.bf16.mxu0 0
    %956 = vmatpush1.bf16.msra.mxu0 0
    %957 = vmatprep.subr.bf16.mxu0 0
    %958 = vmatpush1.bf16.msra.mxu0 0
    %959 = vmatprep.subr.bf16.mxu0 0
    %960 = vmatpush1.bf16.msra.mxu0 0
    %961 = vmatprep.subr.bf16.mxu0 0
    %962 = vmatpush1.bf16.msra.mxu0 0
    %963 = vmatprep.subr.bf16.mxu0 0
    %964 = vmatpush1.bf16.msra.mxu0 0
    %965 = vmatprep.subr.bf16.mxu0 0
    %966 = vmatpush1.bf16.msra.mxu0 0
    %967 = vmatprep.subr.bf16.mxu0 0
    %968 = vmatpush1.bf16.msra.mxu0 0
    %969 = vmatprep.subr.bf16.mxu0 0
    %970 = vmatpush1.bf16.msra.mxu0 0
    %971 = vmatprep.subr.bf16.mxu0 0
    %972 = vmatpush1.bf16.msra.mxu0 0
    %973 = vmatprep.subr.bf16.mxu0 0
    %974 = vmatpush1.bf16.msra.mxu0 0
    %975 = vmatprep.mubr.bf16.mxu0 0
    %976 = vmatmul.mubr.bf16.gmra.mrb[0].mxu0 %v941
    %v977 = vpop.f32.mrb[0].mxu0
    %v978 = vadd.f32 %v86, %v977
    %v979 = vpop.f32.mrb[0].mxu0
    %v980 = vpop.f32.mrb[0].mxu0
    %v981 = vpop.f32.mrb[0].mxu0
    %982 = vdwg.mxu0
    %vm983 = vcmask 25600
    %984 = vst.msk [vmem:[#allocation5] sm:$0x3] %vm983, %v978
    %985 = vmatprep.subr.bf16.mxu0 0
    %986 = vmatpush1.bf16.msra.mxu0 %v801
    %987 = vmatprep.subr.bf16.mxu0 0
    %988 = vmatpush1.bf16.msra.mxu0 %v802
    %989 = vmatprep.subr.bf16.mxu0 0
    %990 = vmatpush1.bf16.msra.mxu0 0
    %991 = vmatprep.subr.bf16.mxu0 0
    %992 = vmatpush1.bf16.msra.mxu0 0
    %993 = vmatprep.subr.bf16.mxu0 0
    %994 = vmatpush1.bf16.msra.mxu0 0
    %995 = vmatprep.subr.bf16.mxu0 0
    %996 = vmatpush1.bf16.msra.mxu0 0
    %997 = vmatprep.subr.bf16.mxu0 0
    %998 = vmatpush1.bf16.msra.mxu0 0
    %999 = vmatprep.subr.bf16.mxu0 0
    %1000 = vmatpush1.bf16.msra.mxu0 0
    %1001 = vmatprep.subr.bf16.mxu0 0
    %1002 = vmatpush1.bf16.msra.mxu0 0
    %1003 = vmatprep.subr.bf16.mxu0 0
    %1004 = vmatpush1.bf16.msra.mxu0 0
    %1005 = vmatprep.subr.bf16.mxu0 0
    %1006 = vmatpush1.bf16.msra.mxu0 0
    %1007 = vmatprep.subr.bf16.mxu0 0
    %1008 = vmatpush1.bf16.msra.mxu0 0
    %1009 = vmatprep.subr.bf16.mxu0 0
    %1010 = vmatpush1.bf16.msra.mxu0 0
    %1011 = vmatprep.subr.bf16.mxu0 0
    %1012 = vmatpush1.bf16.msra.mxu0 0
    %1013 = vmatprep.subr.bf16.mxu0 0
    %1014 = vmatpush1.bf16.msra.mxu0 0
    %1015 = vmatprep.subr.bf16.mxu0 0
    %1016 = vmatpush1.bf16.msra.mxu0 0
    %1017 = vmatprep.mubr.bf16.mxu0 0
    %1018 = vmatmul.mubr.bf16.gmra.mrb[0].mxu0 %v884
    %v1019 = vpop.f32.mrb[0].mxu0
    %v1020 = vadd.f32 %v72, %v1019
    %v1021 = vpop.f32.mrb[0].mxu0
    %v1022 = vpop.f32.mrb[0].mxu0
    %v1023 = vpop.f32.mrb[0].mxu0
    %1024 = vdwg.mxu0
    %v1025 = vtanh.pop %v1020
    %v1026 = vxor.u32 %v1020, 2147483648
    %v1027 = vmul.f32 %v1026, 1.442695
    %v1028 = vpow.pop %v1027
    %v1029 = vadd.f32 %v1028, 1.0
    %v1030 = vrcp.pop %v1029
    %v1031 = vmul.f32 1.0, %v1030
    %v1032 = vsel %vm92, %v1025, %v1031
    %1034 = vrot.lane.b32.xlu0 %v1032, 64
    %v1035 = vpop.permute.xlu0 %1034
    %v1037 = vmul.f32 %v1032, %v1035
    %v1038 = vtanh.pop %v1037
    %1040 = vrot.lane.b32.xlu0 %v1038, 96
    %v1041 = vpop.permute.xlu0 %1040
    %v1043 = vmul.f32 %v1032, %v1041
    %v1044 = vpack.c.bf16 %v1043, %v1043
    %1046 = vrot.lane.b32.xlu0 %v1044, 32
    %v1047 = vpop.permute.xlu0 %1046
    %v1049 = vsel %vm163, %v1047, 0
    %1051 = vmatprep.subr.bf16.mxu0 0
    %1052 = vmatpush1.bf16.msra.mxu0 %v879
    %1053 = vmatprep.subr.bf16.mxu0 0
    %1054 = vmatpush1.bf16.msra.mxu0 %v880
    %1055 = vmatprep.subr.bf16.mxu0 0
    %1056 = vmatpush1.bf16.msra.mxu0 0
    %1057 = vmatprep.subr.bf16.mxu0 0
    %1058 = vmatpush1.bf16.msra.mxu0 0
    %1059 = vmatprep.subr.bf16.mxu0 0
    %1060 = vmatpush1.bf16.msra.mxu0 0
    %1061 = vmatprep.subr.bf16.mxu0 0
    %1062 = vmatpush1.bf16.msra.mxu0 0
    %1063 = vmatprep.subr.bf16.mxu0 0
    %1064 = vmatpush1.bf16.msra.mxu0 0
    %1065 = vmatprep.subr.bf16.mxu0 0
    %1066 = vmatpush1.bf16.msra.mxu0 0
    %1067 = vmatprep.subr.bf16.mxu0 0
    %1068 = vmatpush1.bf16.msra.mxu0 0
    %1069 = vmatprep.subr.bf16.mxu0 0
    %1070 = vmatpush1.bf16.msra.mxu0 0
    %1071 = vmatprep.subr.bf16.mxu0 0
    %1072 = vmatpush1.bf16.msra.mxu0 0
    %1073 = vmatprep.subr.bf16.mxu0 0
    %1074 = vmatpush1.bf16.msra.mxu0 0
    %1075 = vmatprep.subr.bf16.mxu0 0
    %1076 = vmatpush1.bf16.msra.mxu0 0
    %1077 = vmatprep.subr.bf16.mxu0 0
    %1078 = vmatpush1.bf16.msra.mxu0 0
    %1079 = vmatprep.subr.bf16.mxu0 0
    %1080 = vmatpush1.bf16.msra.mxu0 0
    %1081 = vmatprep.subr.bf16.mxu0 0
    %1082 = vmatpush1.bf16.msra.mxu0 0
    %1083 = vmatprep.mubr.bf16.mxu0 0
    %1084 = vmatmul.mubr.bf16.gmra.mrb[0].mxu0 %v1049
    %v1085 = vpop.f32.mrb[0].mxu0
    %v1086 = vadd.f32 %v79, %v1085
    %v1087 = vpop.f32.mrb[0].mxu0
    %v1088 = vpop.f32.mrb[0].mxu0
    %v1089 = vpop.f32.mrb[0].mxu0
    %1090 = vdwg.mxu0
    %v1091 = vmax.f32 %v1086, 0.0
    %v1092 = vpack.c.bf16 %v1091, %v1091
    %v1094 = vsel %vm163, %v1092, 0
    %1096 = vmatprep.subr.bf16.mxu0 0
    %1097 = vmatpush1.bf16.msra.mxu0 %v936
    %1098 = vmatprep.subr.bf16.mxu0 0
    %1099 = vmatpush1.bf16.msra.mxu0 %v937
    %1100 = vmatprep.subr.bf16.mxu0 0
    %1101 = vmatpush1.bf16.msra.mxu0 0
    %1102 = vmatprep.subr.bf16.mxu0 0
    %1103 = vmatpush1.bf16.msra.mxu0 0
    %1104 = vmatprep.subr.bf16.mxu0 0
    %1105 = vmatpush1.bf16.msra.mxu0 0
    %1106 = vmatprep.subr.bf16.mxu0 0
    %1107 = vmatpush1.bf16.msra.mxu0 0
    %1108 = vmatprep.subr.bf16.mxu0 0
    %1109 = vmatpush1.bf16.msra.mxu0 0
    %1110 = vmatprep.subr.bf16.mxu0 0
    %1111 = vmatpush1.bf16.msra.mxu0 0
    %1112 = vmatprep.subr.bf16.mxu0 0
    %1113 = vmatpush1.bf16.msra.mxu0 0
    %1114 = vmatprep.subr.bf16.mxu0 0
    %1115 = vmatpush1.bf16.msra.mxu0 0
    %1116 = vmatprep.subr.bf16.mxu0 0
    %1117 = vmatpush1.bf16.msra.mxu0 0
    %1118 = vmatprep.subr.bf16.mxu0 0
    %1119 = vmatpush1.bf16.msra.mxu0 0
    %1120 = vmatprep.subr.bf16.mxu0 0
    %1121 = vmatpush1.bf16.msra.mxu0 0
    %1122 = vmatprep.subr.bf16.mxu0 0
    %1123 = vmatpush1.bf16.msra.mxu0 0
    %1124 = vmatprep.subr.bf16.mxu0 0
    %1125 = vmatpush1.bf16.msra.mxu0 0
    %1126 = vmatprep.subr.bf16.mxu0 0
    %1127 = vmatpush1.bf16.msra.mxu0 0
    %1128 = vmatprep.mubr.bf16.mxu0 0
    %1129 = vmatmul.mubr.bf16.gmra.mrb[0].mxu0 %v1094
    %v1130 = vpop.f32.mrb[0].mxu0
    %v1131 = vadd.f32 %v86, %v1130
    %v1132 = vpop.f32.mrb[0].mxu0
    %v1133 = vpop.f32.mrb[0].mxu0
    %v1134 = vpop.f32.mrb[0].mxu0
    %1135 = vdwg.mxu0
    %1137 = vrot.lane.b32.xlu0 %v1131, 4
    %v1138 = vpop.permute.xlu0 %1137
    %vm1140 = vcmask 58400
    %1141 = vst.msk [vmem:[#allocation5] sm:$0x3] %vm1140, %v1138
    %1142 = vmatprep.subr.bf16.mxu0 0
    %1143 = vmatpush1.bf16.msra.mxu0 %v801
    %1144 = vmatprep.subr.bf16.mxu0 0
    %1145 = vmatpush1.bf16.msra.mxu0 %v802
    %1146 = vmatprep.subr.bf16.mxu0 0
    %1147 = vmatpush1.bf16.msra.mxu0 0
    %1148 = vmatprep.subr.bf16.mxu0 0
    %1149 = vmatpush1.bf16.msra.mxu0 0
    %1150 = vmatprep.subr.bf16.mxu0 0
    %1151 = vmatpush1.bf16.msra.mxu0 0
    %1152 = vmatprep.subr.bf16.mxu0 0
    %1153 = vmatpush1.bf16.msra.mxu0 0
    %1154 = vmatprep.subr.bf16.mxu0 0
    %1155 = vmatpush1.bf16.msra.mxu0 0
    %1156 = vmatprep.subr.bf16.mxu0 0
    %1157 = vmatpush1.bf16.msra.mxu0 0
    %1158 = vmatprep.subr.bf16.mxu0 0
    %1159 = vmatpush1.bf16.msra.mxu0 0
    %1160 = vmatprep.subr.bf16.mxu0 0
    %1161 = vmatpush1.bf16.msra.mxu0 0
    %1162 = vmatprep.subr.bf16.mxu0 0
    %1163 = vmatpush1.bf16.msra.mxu0 0
    %1164 = vmatprep.subr.bf16.mxu0 0
    %1165 = vmatpush1.bf16.msra.mxu0 0
    %1166 = vmatprep.subr.bf16.mxu0 0
    %1167 = vmatpush1.bf16.msra.mxu0 0
    %1168 = vmatprep.subr.bf16.mxu0 0
    %1169 = vmatpush1.bf16.msra.mxu0 0
    %1170 = vmatprep.subr.bf16.mxu0 0
    %1171 = vmatpush1.bf16.msra.mxu0 0
    %1172 = vmatprep.subr.bf16.mxu0 0
    %1173 = vmatpush1.bf16.msra.mxu0 0
    %1174 = vmatprep.mubr.bf16.mxu0 0
    %1175 = vmatmul.mubr.bf16.gmra.mrb[0].mxu0 %v1049
    %v1176 = vpop.f32.mrb[0].mxu0
    %v1177 = vadd.f32 %v72, %v1176
    %v1178 = vpop.f32.mrb[0].mxu0
    %v1179 = vpop.f32.mrb[0].mxu0
    %v1180 = vpop.f32.mrb[0].mxu0
    %1181 = vdwg.mxu0
    %v1182 = vtanh.pop %v1177
    %v1183 = vxor.u32 %v1177, 2147483648
    %v1184 = vmul.f32 %v1183, 1.442695
    %v1185 = vpow.pop %v1184
    %v1186 = vadd.f32 %v1185, 1.0
    %v1187 = vrcp.pop %v1186
    %v1188 = vmul.f32 1.0, %v1187
    %v1189 = vsel %vm92, %v1182, %v1188
    %1191 = vrot.lane.b32.xlu0 %v1189, 64
    %v1192 = vpop.permute.xlu0 %1191
    %v1194 = vmul.f32 %v1189, %v1192
    %v1195 = vtanh.pop %v1194
    %1197 = vrot.lane.b32.xlu0 %v1195, 96
    %v1198 = vpop.permute.xlu0 %1197
    %v1200 = vmul.f32 %v1189, %v1198
    %v1201 = vpack.c.bf16 %v1200, %v1200
    %1203 = vrot.lane.b32.xlu0 %v1201, 32
    %v1204 = vpop.permute.xlu0 %1203
    %v1206 = vsel %vm163, %v1204, 0
    %1208 = vmatprep.subr.bf16.mxu0 0
    %1209 = vmatpush1.bf16.msra.mxu0 %v879
    %1210 = vmatprep.subr.bf16.mxu0 0
    %1211 = vmatpush1.bf16.msra.mxu0 %v880
    %1212 = vmatprep.subr.bf16.mxu0 0
    %1213 = vmatpush1.bf16.msra.mxu0 0
    %1214 = vmatprep.subr.bf16.mxu0 0
    %1215 = vmatpush1.bf16.msra.mxu0 0
    %1216 = vmatprep.subr.bf16.mxu0 0
    %1217 = vmatpush1.bf16.msra.mxu0 0
    %1218 = vmatprep.subr.bf16.mxu0 0
    %1219 = vmatpush1.bf16.msra.mxu0 0
    %1220 = vmatprep.subr.bf16.mxu0 0
    %1221 = vmatpush1.bf16.msra.mxu0 0
    %1222 = vmatprep.subr.bf16.mxu0 0
    %1223 = vmatpush1.bf16.msra.mxu0 0
    %1224 = vmatprep.subr.bf16.mxu0 0
    %1225 = vmatpush1.bf16.msra.mxu0 0
    %1226 = vmatprep.subr.bf16.mxu0 0
    %1227 = vmatpush1.bf16.msra.mxu0 0
    %1228 = vmatprep.subr.bf16.mxu0 0
    %1229 = vmatpush1.bf16.msra.mxu0 0
    %1230 = vmatprep.subr.bf16.mxu0 0
    %1231 = vmatpush1.bf16.msra.mxu0 0
    %1232 = vmatprep.subr.bf16.mxu0 0
    %1233 = vmatpush1.bf16.msra.mxu0 0
    %1234 = vmatprep.subr.bf16.mxu0 0
    %1235 = vmatpush1.bf16.msra.mxu0 0
    %1236 = vmatprep.subr.bf16.mxu0 0
    %1237 = vmatpush1.bf16.msra.mxu0 0
    %1238 = vmatprep.subr.bf16.mxu0 0
    %1239 = vmatpush1.bf16.msra.mxu0 0
    %1240 = vmatprep.mubr.bf16.mxu0 0
    %1241 = vmatmul.mubr.bf16.gmra.mrb[0].mxu0 %v1206
    %v1242 = vpop.f32.mrb[0].mxu0
    %v1243 = vadd.f32 %v79, %v1242
    %v1244 = vpop.f32.mrb[0].mxu0
    %v1245 = vpop.f32.mrb[0].mxu0
    %v1246 = vpop.f32.mrb[0].mxu0
    %1247 = vdwg.mxu0
    %v1248 = vmax.f32 %v1243, 0.0
    %v1249 = vpack.c.bf16 %v1248, %v1248
    %v1251 = vsel %vm163, %v1249, 0
    %1253 = vmatprep.subr.bf16.mxu0 0
    %1254 = vmatpush1.bf16.msra.mxu0 %v936
    %1255 = vmatprep.subr.bf16.mxu0 0
    %1256 = vmatpush1.bf16.msra.mxu0 %v937
    %1257 = vmatprep.subr.bf16.mxu0 0
    %1258 = vmatpush1.bf16.msra.mxu0 0
    %1259 = vmatprep.subr.bf16.mxu0 0
    %1260 = vmatpush1.bf16.msra.mxu0 0
    %1261 = vmatprep.subr.bf16.mxu0 0
    %1262 = vmatpush1.bf16.msra.mxu0 0
    %1263 = vmatprep.subr.bf16.mxu0 0
    %1264 = vmatpush1.bf16.msra.mxu0 0
    %1265 = vmatprep.subr.bf16.mxu0 0
    %1266 = vmatpush1.bf16.msra.mxu0 0
    %1267 = vmatprep.subr.bf16.mxu0 0
    %1268 = vmatpush1.bf16.msra.mxu0 0
    %1269 = vmatprep.subr.bf16.mxu0 0
    %1270 = vmatpush1.bf16.msra.mxu0 0
    %1271 = vmatprep.subr.bf16.mxu0 0
    %1272 = vmatpush1.bf16.msra.mxu0 0
    %1273 = vmatprep.subr.bf16.mxu0 0
    %1274 = vmatpush1.bf16.msra.mxu0 0
    %1275 = vmatprep.subr.bf16.mxu0 0
    %1276 = vmatpush1.bf16.msra.mxu0 0
    %1277 = vmatprep.subr.bf16.mxu0 0
    %1278 = vmatpush1.bf16.msra.mxu0 0
    %1279 = vmatprep.subr.bf16.mxu0 0
    %1280 = vmatpush1.bf16.msra.mxu0 0
    %1281 = vmatprep.subr.bf16.mxu0 0
    %1282 = vmatpush1.bf16.msra.mxu0 0
    %1283 = vmatprep.subr.bf16.mxu0 0
    %1284 = vmatpush1.bf16.msra.mxu0 0
    %1285 = vmatprep.mubr.bf16.mxu0 0
    %1286 = vmatmul.mubr.bf16.gmra.mrb[0].mxu0 %v1251
    %v1287 = vpop.f32.mrb[0].mxu0
    %v1288 = vadd.f32 %v86, %v1287
    %v1289 = vpop.f32.mrb[0].mxu0
    %v1290 = vpop.f32.mrb[0].mxu0
    %v1291 = vpop.f32.mrb[0].mxu0
    %1292 = vdwg.mxu0
    %1294 = vrot.lane.b32.xlu0 %v1288, 8
    %v1295 = vpop.permute.xlu0 %1294
    %vm1297 = vcmask 91200
    %1298 = vst.msk [vmem:[#allocation5] sm:$0x3] %vm1297, %v1295
    // Predicated region
    $region46: #{tpu_custom_call.1} parent=1 // pred_check
      _
    $region47: #{tpu_custom_call.1} parent=1 // pred_check_branch
      %1300 = sbr.rel (0) target = $region49
    $region48: #{tpu_custom_call.1} parent=1 // pred_region
      %s1302 = ssub.s32 32, 32
      %1303 = vsyncadd [#allocation4], %s1302
      %s1305 = sshll.u32 [#allocation5], 4
      %s1306 = int_to_ptr.vmem [resolvable:$true] %s1305
      %1308 = dma.vmem_to_hbm [thread:$0]  %s1306, 32, %s10, [#allocation4]
    $region49: #{tpu_custom_call.1} parent=1 // pred_fallthru
      _
    // Predicated region
    $region50: #{tpu_custom_call.1} parent=1 // pred_check
      _
    $region51: #{tpu_custom_call.1} parent=1 // pred_check_branch
      %1310 = sbr.rel (0) target = $region53
    $region52: #{tpu_custom_call.1} parent=1 // pred_region
      %1311 = dma.done [#allocation4], 32
    $region53: #{tpu_custom_call.1} parent=1 // pred_fallthru
      _
    %1312 = vsyncpa [#allocation3], 1
    %1313 = vsyncpa [#allocation4], 1

</llo_original>
